<compile_context>
chip_gen: v6e
topology: v6e:2x2x1
jax: 0.10.0
libtpu: 0.0.40
codegen_flags: <defaults>
</compile_context>

<pallas_src>
import functools

import jax
import jax.numpy as jnp
from jax.experimental import pallas as pl
from jax.experimental.pallas import tpu as pltpu


def _round_up(x, m):
    return (x + m - 1) // m * m


def fcn_head_kernel(x_ref, w1_ref, b1_ref, w2_ref, b2_ref, out_ref, *,
                    rows_out, wp):
    # x_ref  : (1, Cin, block_l)   zero-padded, HW-flattened NCHW input window
    # w1_ref : (9, Cinter, Cin)    BN-folded 3x3 weights, tap k = dy*3 + dx
    # b1_ref : (Cinter, 1)  f32    BN-folded bias
    # w2_ref : (Cout, Cinter)      1x1 conv weights
    # b2_ref : (Cout, 1)    f32    1x1 conv bias
    # out_ref: (1, Cout, rows_out) lane-dense output slab (rows_out = tile_h*Wp)
    x = x_ref[0]                                        # (Cin, block_l)

    # 3x3 conv (BN folded) as 9 MXU matmuls over the same lane-flat operand.
    # Shifting RHS columns == shifting result columns, so each (dy, dx) tap
    # alignment is a static lane slice of the narrow (Cinter, .) result.
    # Taps accumulate in a traced value, not through a scratch Ref.
    acc = None
    for dy in range(3):
        for dx in range(3):
            k = dy * 3 + dx
            y = jnp.dot(w1_ref[k], x, preferred_element_type=jnp.float32)
            y = y[:, dy * wp + dx: dy * wp + dx + rows_out]
            acc = y if acc is None else acc + y

    # Folded-BN bias + ReLU in f32 (VPU work stays f32 even for bf16 inputs).
    # Dropout(0.1) is the identity at inference.
    h = jnp.maximum(acc + b1_ref[...], 0.0)             # (Cinter, rows_out)

    # 1x1 conv + bias; channels on sublanes, spatial (lane-dense) on lanes.
    z = jnp.dot(w2_ref[...], h.astype(w2_ref.dtype),
                preferred_element_type=jnp.float32) + b2_ref[...]
    out_ref[...] = z[None].astype(out_ref.dtype)


def _choose_tile_h(H, Wp, Cin, Cout, in_isz, out_isz, budget_bytes):
    """Largest H tile whose per-step working set fits the VMEM budget."""
    cin_p = _round_up(max(Cin, 1), 8)
    cout_p = _round_up(max(Cout, 1), 8)

    def est(th):
        block_l = (th + 3) * Wp
        rows = th * Wp
        return (2 * cin_p * block_l * in_isz          # double-buffered input
                + 2 * cout_p * rows * out_isz         # double-buffered output
                + 2 * 8 * rows * 4)                   # acc + h working set

    if est(H) <= budget_bytes:
        return H                                      # whole image per step
    divisors = [t for t in range(H - 1, 0, -1)
                if H % t == 0 and (t * Wp) % 128 == 0]
    for t in divisors:
        if est(t) <= budget_bytes:
            return t
    return divisors[-1] if divisors else H            # best effort


def fcn_head(x_nchw, w1, gamma, beta, mean, var, w2, b2, *, eps=1e-5,
             tile_h=None, compute_dtype=None,
             vmem_budget_bytes=28 * 1024 * 1024,
             vmem_limit_bytes=48 * 1024 * 1024):
    """FCNHead forward (inference-mode BN, identity dropout).

    x_nchw: (N, Cin, H, W);  w1: (Cinter, Cin, 3, 3);  w2: (Cout, Cinter, 1, 1).
    compute_dtype: optional matmul dtype (e.g. jnp.bfloat16 on v6e/v7x halves
      HBM/VMEM traffic); tap accumulation, bias, ReLU, final bias stay in f32.
    vmem_budget_bytes / vmem_limit_bytes: defaults leave headroom on v7x's
      64 MiB VMEM; both may be raised (e.g. ~96 MiB limit) on v5e/v6e (128 MiB)
      for larger tiles on big images.
    """
    N, Cin, H, W = x_nchw.shape
    Cinter = w1.shape[0]
    Cout = w2.shape[0]
    out_dtype = x_nchw.dtype
    cdt = compute_dtype if compute_dtype is not None else x_nchw.dtype

    # Pad W (left 1, right >= 1) so each padded row is self-contained and the
    # right pad absorbs the dx overreach of the last real column.
    Wp = _round_up(W + 2, 8)

    in_isz = jnp.dtype(cdt).itemsize
    out_isz = jnp.dtype(out_dtype).itemsize
    if tile_h is None:
        tile_h = _choose_tile_h(H, Wp, Cin, Cout, in_isz, out_isz,
                                vmem_budget_bytes)
    if H % tile_h != 0:
        raise ValueError("tile_h must divide H")
    num_t = H // tile_h
    if num_t > 1 and (tile_h * Wp) % 128 != 0:
        raise ValueError("tile_h * padded_W must be a multiple of 128 when "
                         "H is tiled")

    rows_out = tile_h * Wp
    block_l = (tile_h + 3) * Wp      # covers the +2 row / +2 col tap reach

    # NCHW stays NCHW: zero-pad H by (1, 2) and W by (1, Wp - W - 1), then
    # flatten (H+3, Wp) onto the lane axis (contiguous reshape, free in HBM).
    xp = jnp.pad(x_nchw, ((0, 0), (0, 0), (1, 2), (1, Wp - W - 1))).astype(cdt)
    xf = xp.reshape(N, Cin, (H + 3) * Wp)
    if num_t == 1:
        xw = xf                                              # (N, Cin, L)
    else:
        # Materialize overlapping halo windows once in HBM (only ~3/tile_h
        # duplicated rows); kernel then uses plain Blocked BlockSpecs.
        xw = jnp.stack([xf[:, :, t * rows_out: t * rows_out + block_l]
                        for t in range(num_t)], axis=1)
        xw = xw.reshape(N * num_t, Cin, block_l)

    # Fold inference BatchNorm into the 3x3 conv.
    s = gamma * jax.lax.rsqrt(var + eps)                     # (Cinter,)
    w1_f = w1 * s[:, None, None, None]                       # (Cinter,Cin,3,3)
    # (Cinter, Cin, 3, 3) -> (3, 3, Cinter, Cin) -> (9, Cinter, Cin)
    w1_r = jnp.transpose(w1_f, (2, 3, 0, 1)).reshape(9, Cinter, Cin).astype(cdt)
    b1_r = (beta - mean * s).reshape(Cinter, 1).astype(jnp.float32)
    w2_r = w2.reshape(Cout, Cinter).astype(cdt)
    b2_r = b2.reshape(Cout, 1).astype(jnp.float32)

    kernel = functools.partial(fcn_head_kernel, rows_out=rows_out, wp=Wp)
    out_flat = pl.pallas_call(
        kernel,
        out_shape=jax.ShapeDtypeStruct((N, Cout, H * Wp), out_dtype),
        grid_spec=pltpu.PrefetchScalarGridSpec(
            num_scalar_prefetch=0,
            grid=(N, num_t),
            in_specs=[
                pl.BlockSpec((1, Cin, block_l),
                             lambda n, t: (n * num_t + t, 0, 0)),
                pl.BlockSpec((9, Cinter, Cin), lambda n, t: (0, 0, 0)),
                pl.BlockSpec((Cinter, 1), lambda n, t: (0, 0)),
                pl.BlockSpec((Cout, Cinter), lambda n, t: (0, 0)),
                pl.BlockSpec((Cout, 1), lambda n, t: (0, 0)),
            ],
            out_specs=pl.BlockSpec((1, Cout, rows_out),
                                   lambda n, t: (n, 0, t)),
        ),
        compiler_params=pltpu.CompilerParams(
            dimension_semantics=("parallel", "parallel"),
            vmem_limit_bytes=vmem_limit_bytes),
    )(xw, w1_r, b1_r, w2_r, b2_r)

    # (N, Cout, H*Wp) -> (N, Cout, H, Wp) -> crop the W padding.  Already NCHW.
    return out_flat.reshape(N, Cout, H, Wp)[:, :, :, :W]


def fcn_head_reference(x, w1, gamma, beta, mean, var, w2, b2, *, eps=1e-5):
    """Pure-JAX/XLA reference (inference-mode BN, identity dropout)."""
    y = jax.lax.conv_general_dilated(
        x, w1, window_strides=(1, 1), padding=((1, 1), (1, 1)),
        dimension_numbers=("NCHW", "OIHW", "NCHW"))
    c = y.shape[1]
    y = (y - mean.reshape(1, c, 1, 1)) * jax.lax.rsqrt(
        var.reshape(1, c, 1, 1) + eps) * gamma.reshape(1, c, 1, 1) \
        + beta.reshape(1, c, 1, 1)
    y = jnp.maximum(y, 0.0)
    z = jax.lax.conv_general_dilated(
        y, w2, window_strides=(1, 1), padding=((0, 0), (0, 0)),
        dimension_numbers=("NCHW", "OIHW", "NCHW"))
    return z + b2.reshape(1, -1, 1, 1)


if __name__ == "__main__":
    def make_params(key, N, Cin, H, W, Cout):
        Cinter = Cin // 4
        ks = jax.random.split(key, 8)
        x = jax.random.normal(ks[0], (N, Cin, H, W), jnp.float32)
        w1 = jax.random.normal(ks[1], (Cinter, Cin, 3, 3), jnp.float32) * 0.1
        gamma = jax.random.normal(ks[2], (Cinter,), jnp.float32) * 0.1 + 1.0
        beta = jax.random.normal(ks[3], (Cinter,), jnp.float32) * 0.1
        mean = jax.random.normal(ks[4], (Cinter,), jnp.float32) * 0.1
        var = jax.random.uniform(ks[5], (Cinter,), jnp.float32,
                                 minval=0.5, maxval=1.5)
        w2 = jax.random.normal(ks[6], (Cout, Cinter, 1, 1), jnp.float32) * 0.1
        b2 = jax.random.normal(ks[7], (Cout,), jnp.float32) * 0.1
        return x, w1, gamma, beta, mean, var, w2, b2

    k1, k2 = jax.random.split(jax.random.PRNGKey(0))

    # Case 1: whole-image tiles (VMEM-budget path), grid (N=2, 1).
    args1 = make_params(k1, 2, 16, 16, 16, 2)
    out1 = jax.block_until_ready(fcn_head(*args1))
    ref1 = jax.block_until_ready(fcn_head_reference(*args1))
    assert out1.shape == (2, 2, 16, 16), out1.shape
    assert jnp.allclose(out1, ref1, atol=1e-4, rtol=1e-4), (
        float(jnp.max(jnp.abs(out1 - ref1))))

    # Case 2: forced H tiling (halo-window path), grid (N=1, 2).
    args2 = make_params(k2, 1, 8, 32, 16, 3)
    out2 = jax.block_until_ready(fcn_head(*args2, tile_h=16))
    ref2 = jax.block_until_ready(fcn_head_reference(*args2))
    assert out2.shape == (1, 3, 32, 16), out2.shape
    assert jnp.allclose(out2, ref2, atol=1e-4, rtol=1e-4), (
        float(jnp.max(jnp.abs(out2 - ref2))))

    print("KERNEL_OK")
</pallas_src>

<mosaic_0001>
module attributes {stable_mosaic.version = 11 : i64} {
  func.func @fcn_head_kernel(%arg0: i32, %arg1: i32, %arg2: memref<1x16x456xf32, #tpu.memory_space<vmem>>, %arg3: memref<9x4x16xf32, #tpu.memory_space<vmem>>, %arg4: memref<4x1xf32, #tpu.memory_space<vmem>>, %arg5: memref<2x4xf32, #tpu.memory_space<vmem>>, %arg6: memref<2x1xf32, #tpu.memory_space<vmem>>, %arg7: memref<1x2x384xf32, #tpu.memory_space<vmem>>) attributes {dimension_semantics = [#tpu.dimension_semantics<parallel>, #tpu.dimension_semantics<parallel>], iteration_bounds = array<i64: 2, 1>, scalar_prefetch = 0 : i64, scratch_operands = 0 : i64, tpu.core_type = #tpu.core_type<tc>, window_params = [{transform_indices = @transform_0, window_bounds = array<i64: 1, 16, 456>}, {pipeline_mode = #tpu.pipeline_mode<synchronous>, transform_indices = @transform_1, window_bounds = array<i64: 9, 4, 16>}, {pipeline_mode = #tpu.pipeline_mode<synchronous>, transform_indices = @transform_2, window_bounds = array<i64: 4, 1>}, {pipeline_mode = #tpu.pipeline_mode<synchronous>, transform_indices = @transform_3, window_bounds = array<i64: 2, 4>}, {pipeline_mode = #tpu.pipeline_mode<synchronous>, transform_indices = @transform_4, window_bounds = array<i64: 2, 1>}, {transform_indices = @transform_5, window_bounds = array<i64: 1, 2, 384>}]} {
    %c0 = arith.constant 0 : index
    %c0_0 = arith.constant 0 : index
    %c0_1 = arith.constant 0 : index
    %0 = vector.load %arg2[%c0, %c0_0, %c0_1] : memref<1x16x456xf32, #tpu.memory_space<vmem>>, vector<1x16x456xf32>
    %1 = vector.shape_cast %0 : vector<1x16x456xf32> to vector<16x456xf32>
    %c0_2 = arith.constant 0 : index
    %c0_3 = arith.constant 0 : index
    %c0_4 = arith.constant 0 : index
    %2 = vector.load %arg3[%c0_2, %c0_3, %c0_4] : memref<9x4x16xf32, #tpu.memory_space<vmem>>, vector<1x4x16xf32>
    %3 = vector.shape_cast %2 : vector<1x4x16xf32> to vector<4x16xf32>
    %cst = arith.constant dense<0.000000e+00> : vector<4x456xf32>
    %4 = tpu.matmul %3, %1, %cst {dimension_numbers = #tpu.dot_dimension_numbers<[1], [0], [0], [1], [0, 0, 1, 1], [], []>} : vector<4x16xf32>, vector<16x456xf32>, vector<4x456xf32> -> vector<4x456xf32>
    %5 = vector.extract_strided_slice %4 {offsets = [0, 0], sizes = [4, 384], strides = [1, 1]} : vector<4x456xf32> to vector<4x384xf32>
    %c1 = arith.constant 1 : index
    %c0_5 = arith.constant 0 : index
    %c0_6 = arith.constant 0 : index
    %6 = vector.load %arg3[%c1, %c0_5, %c0_6] : memref<9x4x16xf32, #tpu.memory_space<vmem>>, vector<1x4x16xf32>
    %7 = vector.shape_cast %6 : vector<1x4x16xf32> to vector<4x16xf32>
    %cst_7 = arith.constant dense<0.000000e+00> : vector<4x456xf32>
    %8 = tpu.matmul %7, %1, %cst_7 {dimension_numbers = #tpu.dot_dimension_numbers<[1], [0], [0], [1], [0, 0, 1, 1], [], []>} : vector<4x16xf32>, vector<16x456xf32>, vector<4x456xf32> -> vector<4x456xf32>
    %9 = vector.extract_strided_slice %8 {offsets = [0, 1], sizes = [4, 384], strides = [1, 1]} : vector<4x456xf32> to vector<4x384xf32>
    %10 = arith.addf %5, %9 : vector<4x384xf32>
    %c2 = arith.constant 2 : index
    %c0_8 = arith.constant 0 : index
    %c0_9 = arith.constant 0 : index
    %11 = vector.load %arg3[%c2, %c0_8, %c0_9] : memref<9x4x16xf32, #tpu.memory_space<vmem>>, vector<1x4x16xf32>
    %12 = vector.shape_cast %11 : vector<1x4x16xf32> to vector<4x16xf32>
    %cst_10 = arith.constant dense<0.000000e+00> : vector<4x456xf32>
    %13 = tpu.matmul %12, %1, %cst_10 {dimension_numbers = #tpu.dot_dimension_numbers<[1], [0], [0], [1], [0, 0, 1, 1], [], []>} : vector<4x16xf32>, vector<16x456xf32>, vector<4x456xf32> -> vector<4x456xf32>
    %14 = vector.extract_strided_slice %13 {offsets = [0, 2], sizes = [4, 384], strides = [1, 1]} : vector<4x456xf32> to vector<4x384xf32>
    %15 = arith.addf %10, %14 : vector<4x384xf32>
    %c3 = arith.constant 3 : index
    %c0_11 = arith.constant 0 : index
    %c0_12 = arith.constant 0 : index
    %16 = vector.load %arg3[%c3, %c0_11, %c0_12] : memref<9x4x16xf32, #tpu.memory_space<vmem>>, vector<1x4x16xf32>
    %17 = vector.shape_cast %16 : vector<1x4x16xf32> to vector<4x16xf32>
    %cst_13 = arith.constant dense<0.000000e+00> : vector<4x456xf32>
    %18 = tpu.matmul %17, %1, %cst_13 {dimension_numbers = #tpu.dot_dimension_numbers<[1], [0], [0], [1], [0, 0, 1, 1], [], []>} : vector<4x16xf32>, vector<16x456xf32>, vector<4x456xf32> -> vector<4x456xf32>
    %19 = vector.extract_strided_slice %18 {offsets = [0, 24], sizes = [4, 384], strides = [1, 1]} : vector<4x456xf32> to vector<4x384xf32>
    %20 = arith.addf %15, %19 : vector<4x384xf32>
    %c4 = arith.constant 4 : index
    %c0_14 = arith.constant 0 : index
    %c0_15 = arith.constant 0 : index
    %21 = vector.load %arg3[%c4, %c0_14, %c0_15] : memref<9x4x16xf32, #tpu.memory_space<vmem>>, vector<1x4x16xf32>
    %22 = vector.shape_cast %21 : vector<1x4x16xf32> to vector<4x16xf32>
    %cst_16 = arith.constant dense<0.000000e+00> : vector<4x456xf32>
    %23 = tpu.matmul %22, %1, %cst_16 {dimension_numbers = #tpu.dot_dimension_numbers<[1], [0], [0], [1], [0, 0, 1, 1], [], []>} : vector<4x16xf32>, vector<16x456xf32>, vector<4x456xf32> -> vector<4x456xf32>
    %24 = vector.extract_strided_slice %23 {offsets = [0, 25], sizes = [4, 384], strides = [1, 1]} : vector<4x456xf32> to vector<4x384xf32>
    %25 = arith.addf %20, %24 : vector<4x384xf32>
    %c5 = arith.constant 5 : index
    %c0_17 = arith.constant 0 : index
    %c0_18 = arith.constant 0 : index
    %26 = vector.load %arg3[%c5, %c0_17, %c0_18] : memref<9x4x16xf32, #tpu.memory_space<vmem>>, vector<1x4x16xf32>
    %27 = vector.shape_cast %26 : vector<1x4x16xf32> to vector<4x16xf32>
    %cst_19 = arith.constant dense<0.000000e+00> : vector<4x456xf32>
    %28 = tpu.matmul %27, %1, %cst_19 {dimension_numbers = #tpu.dot_dimension_numbers<[1], [0], [0], [1], [0, 0, 1, 1], [], []>} : vector<4x16xf32>, vector<16x456xf32>, vector<4x456xf32> -> vector<4x456xf32>
    %29 = vector.extract_strided_slice %28 {offsets = [0, 26], sizes = [4, 384], strides = [1, 1]} : vector<4x456xf32> to vector<4x384xf32>
    %30 = arith.addf %25, %29 : vector<4x384xf32>
    %c6 = arith.constant 6 : index
    %c0_20 = arith.constant 0 : index
    %c0_21 = arith.constant 0 : index
    %31 = vector.load %arg3[%c6, %c0_20, %c0_21] : memref<9x4x16xf32, #tpu.memory_space<vmem>>, vector<1x4x16xf32>
    %32 = vector.shape_cast %31 : vector<1x4x16xf32> to vector<4x16xf32>
    %cst_22 = arith.constant dense<0.000000e+00> : vector<4x456xf32>
    %33 = tpu.matmul %32, %1, %cst_22 {dimension_numbers = #tpu.dot_dimension_numbers<[1], [0], [0], [1], [0, 0, 1, 1], [], []>} : vector<4x16xf32>, vector<16x456xf32>, vector<4x456xf32> -> vector<4x456xf32>
    %34 = vector.extract_strided_slice %33 {offsets = [0, 48], sizes = [4, 384], strides = [1, 1]} : vector<4x456xf32> to vector<4x384xf32>
    %35 = arith.addf %30, %34 : vector<4x384xf32>
    %c7 = arith.constant 7 : index
    %c0_23 = arith.constant 0 : index
    %c0_24 = arith.constant 0 : index
    %36 = vector.load %arg3[%c7, %c0_23, %c0_24] : memref<9x4x16xf32, #tpu.memory_space<vmem>>, vector<1x4x16xf32>
    %37 = vector.shape_cast %36 : vector<1x4x16xf32> to vector<4x16xf32>
    %cst_25 = arith.constant dense<0.000000e+00> : vector<4x456xf32>
    %38 = tpu.matmul %37, %1, %cst_25 {dimension_numbers = #tpu.dot_dimension_numbers<[1], [0], [0], [1], [0, 0, 1, 1], [], []>} : vector<4x16xf32>, vector<16x456xf32>, vector<4x456xf32> -> vector<4x456xf32>
    %39 = vector.extract_strided_slice %38 {offsets = [0, 49], sizes = [4, 384], strides = [1, 1]} : vector<4x456xf32> to vector<4x384xf32>
    %40 = arith.addf %35, %39 : vector<4x384xf32>
    %c8 = arith.constant 8 : index
    %c0_26 = arith.constant 0 : index
    %c0_27 = arith.constant 0 : index
    %41 = vector.load %arg3[%c8, %c0_26, %c0_27] : memref<9x4x16xf32, #tpu.memory_space<vmem>>, vector<1x4x16xf32>
    %42 = vector.shape_cast %41 : vector<1x4x16xf32> to vector<4x16xf32>
    %cst_28 = arith.constant dense<0.000000e+00> : vector<4x456xf32>
    %43 = tpu.matmul %42, %1, %cst_28 {dimension_numbers = #tpu.dot_dimension_numbers<[1], [0], [0], [1], [0, 0, 1, 1], [], []>} : vector<4x16xf32>, vector<16x456xf32>, vector<4x456xf32> -> vector<4x456xf32>
    %44 = vector.extract_strided_slice %43 {offsets = [0, 50], sizes = [4, 384], strides = [1, 1]} : vector<4x456xf32> to vector<4x384xf32>
    %45 = arith.addf %40, %44 : vector<4x384xf32>
    %c0_29 = arith.constant 0 : index
    %c0_30 = arith.constant 0 : index
    %46 = vector.load %arg4[%c0_29, %c0_30] : memref<4x1xf32, #tpu.memory_space<vmem>>, vector<4x1xf32>
    %47 = vector.broadcast %46 : vector<4x1xf32> to vector<4x384xf32>
    %48 = arith.addf %45, %47 : vector<4x384xf32>
    %cst_31 = arith.constant 0.000000e+00 : f32
    %49 = vector.broadcast %cst_31 : f32 to vector<4x384xf32>
    %50 = arith.maximumf %48, %49 : vector<4x384xf32>
    %c0_32 = arith.constant 0 : index
    %c0_33 = arith.constant 0 : index
    %51 = vector.load %arg5[%c0_32, %c0_33] : memref<2x4xf32, #tpu.memory_space<vmem>>, vector<2x4xf32>
    %cst_34 = arith.constant dense<0.000000e+00> : vector<2x384xf32>
    %52 = tpu.matmul %51, %50, %cst_34 {dimension_numbers = #tpu.dot_dimension_numbers<[1], [0], [0], [1], [0, 0, 1, 1], [], []>} : vector<2x4xf32>, vector<4x384xf32>, vector<2x384xf32> -> vector<2x384xf32>
    %c0_35 = arith.constant 0 : index
    %c0_36 = arith.constant 0 : index
    %53 = vector.load %arg6[%c0_35, %c0_36] : memref<2x1xf32, #tpu.memory_space<vmem>>, vector<2x1xf32>
    %54 = vector.broadcast %53 : vector<2x1xf32> to vector<2x384xf32>
    %55 = arith.addf %52, %54 : vector<2x384xf32>
    %56 = vector.shape_cast %55 : vector<2x384xf32> to vector<1x2x384xf32>
    %c0_37 = arith.constant 0 : index
    %c0_38 = arith.constant 0 : index
    %c0_39 = arith.constant 0 : index
    %57 = vector.load %arg7[%c0_37, %c0_38, %c0_39] : memref<1x2x384xf32, #tpu.memory_space<vmem>>, vector<1x2x384xf32>
    tpu.vector_store %arg7[%c0_37, %c0_38, %c0_39], %56 {strides = array<i32>} : memref<1x2x384xf32, #tpu.memory_space<vmem>>, vector<1x2x384xf32>,
    return
  }
  func.func @transform_0(%arg0: i32, %arg1: i32) -> (i32, i32, i32) {
    %c1_i32 = arith.constant 1 : i32
    %0 = arith.muli %arg0, %c1_i32 : i32
    %1 = arith.addi %0, %arg1 : i32
    %c0_i32 = arith.constant 0 : i32
    %c0_i32_0 = arith.constant 0 : i32
    %c0_i32_1 = arith.constant 0 : i32
    return %1, %c0_i32, %c0_i32_0 : i32, i32, i32
  }
  func.func @transform_1(%arg0: i32, %arg1: i32) -> (i32, i32, i32) {
    %c0_i32 = arith.constant 0 : i32
    %c0_i32_0 = arith.constant 0 : i32
    %c0_i32_1 = arith.constant 0 : i32
    %c0_i32_2 = arith.constant 0 : i32
    return %c0_i32, %c0_i32_0, %c0_i32_1 : i32, i32, i32
  }
  func.func @transform_2(%arg0: i32, %arg1: i32) -> (i32, i32) {
    %c0_i32 = arith.constant 0 : i32
    %c0_i32_0 = arith.constant 0 : i32
    %c0_i32_1 = arith.constant 0 : i32
    return %c0_i32, %c0_i32_0 : i32, i32
  }
  func.func @transform_3(%arg0: i32, %arg1: i32) -> (i32, i32) {
    %c0_i32 = arith.constant 0 : i32
    %c0_i32_0 = arith.constant 0 : i32
    %c0_i32_1 = arith.constant 0 : i32
    return %c0_i32, %c0_i32_0 : i32, i32
  }
  func.func @transform_4(%arg0: i32, %arg1: i32) -> (i32, i32) {
    %c0_i32 = arith.constant 0 : i32
    %c0_i32_0 = arith.constant 0 : i32
    %c0_i32_1 = arith.constant 0 : i32
    return %c0_i32, %c0_i32_0 : i32, i32
  }
  func.func @transform_5(%arg0: i32, %arg1: i32) -> (i32, i32, i32) {
    %c0_i32 = arith.constant 0 : i32
    %c0_i32_0 = arith.constant 0 : i32
    return %arg0, %c0_i32, %arg1 : i32, i32, i32
  }
}

</mosaic_0001>

<llo_original>
// kernel: tpu_custom_call.1
$region0: #{tpu_custom_call.1}
  #allocation0 [shape = 'u32[]', space=smem, size = 0x4, offset = 0x4, fixed_abs, tag = 'smem constant byte address 0x4 - core index']
  #allocation1 [shape = 'u32[144,128]{1,0:T(1,128)}', space=vmem, size = 0x12000, scoped, tag = 'internal scratch']
  %s0 = inlined_call_operand.hbm [shape: f32[2,16,456], index: 0, kind: input, shape index: {}]
  %s1 = inlined_call_operand.hbm [shape: f32[9,4,16], index: 1, kind: input, shape index: {}]
  %s2 = inlined_call_operand.vmem [shape: f32[4,1], index: 2, kind: input, shape index: {}]
  %s3 = inlined_call_operand.vmem [shape: f32[2,4], index: 3, kind: input, shape index: {}]
  %s4 = inlined_call_operand.vmem [shape: f32[2,1], index: 4, kind: input, shape index: {}]
  %s5 = inlined_call_operand.hbm [shape: f32[2,2,384], index: 5, kind: output, shape index: {}]
  %s6 = sld [smem:[#allocation0]]
  $region61: #{tpu_custom_call.1} parent=0
    _
  %s8 = ssub.s32 1, %s6
  %s9 = scalar_select 0, %s8, %s6
  $region1: #{tpu_custom_call.1} parent=0
    #allocation2 [shape = 'u8[65536]{0}', space=vmem, size = 0x10000, scoped, tag = 'input window, operand 0']
    #allocation3 [shape = 's32[2]{0}', space=sflag, size = 0x8, scoped, tag = 'scoped memory for tpu_custom_call.1']
    #allocation4 [shape = 's32[2]{0}', space=sflag, size = 0x8, scoped, tag = 'scoped memory for tpu_custom_call.1']
    #allocation5 [shape = 'u8[18432]{0}', space=vmem, size = 0x4800, scoped, tag = 'input window, operand 1, single buffered']
    #allocation6 [shape = 's32[1]{0}', space=sflag, size = 0x4, scoped, tag = 'scoped memory for tpu_custom_call.1']
    #allocation7 [shape = 'u8[6144]{0}', space=vmem, size = 0x1800, scoped, tag = 'output window, operand 0']
    %10 = vsyncpa [#allocation3], 0
    %s11 = scalar_lea.sflag [#allocation3], 1
    %12 = vsyncpa %s11, 0
    %13 = vsyncpa [#allocation6], 0
    %14 = vsyncpa [#allocation4], 0
    %s15 = scalar_lea.sflag [#allocation4], 1
    %16 = vsyncpa %s15, 0
    loop: start=0, step=1, limit=4
    $region2: #{tpu_custom_call.1} parent=1 // loop_pre_header
      _
    $region3: #{tpu_custom_call.1} parent=1 // loop_header
      %s18 = sphi 0, %s22
      %p19 = scmp.ge.s32.totalorder %s18, 4
      %s25 = sphi 0, %s37
      %s26 = sphi 0, %s33
      %s27 = sphi 0, %s25
      %s28 = sphi 0, %s26
      %s29 = sphi 0, %s27
      %s30 = sphi 0, %s28
      %s42 = sphi 0, %s44
      %s45 = sphi 0, %s42
      %s46 = sphi 0, %s45
      %s62 = sphi 0, %s46
      %s66 = sphi 0, %s66
      %s68 = sphi 0, %s66
      %s69 = sphi 0, %s68
      %s83 = sphi 0, %s69
      %s87 = sphi 0, %s87
      %s89 = sphi 0, %s87
      %s90 = sphi 0, %s89
      %s104 = sphi 0, %s90
      %s108 = sphi 0, %s108
      %s110 = sphi 0, %s108
      %s111 = sphi 0, %s110
      %s125 = sphi 0, %s111
      %s129 = sphi 0, %s129
      %s131 = sphi 0, %s129
      %s132 = sphi 0, %s131
      %s146 = sphi 0, %s132
      %s154 = sphi 0, %s156
      %s157 = sphi 0, %s154
      %s158 = sphi 0, %s157
      %s174 = sphi 0, %s158
    $region4: #{tpu_custom_call.1} parent=1 // loop_header_branch
      %21 = sbr.rel (%p19) target = $region8
    $region5: #{tpu_custom_call.1} parent=1 // loop_body
      %s23 = ssub.s32 %s18, 1
      %s24 = ssub.s32 %s18, 2
      %s31 = sadd.s32 1, %s26
      %p32 = scmp.ge.s32.totalorder %s31, 1
      %s33 = scalar_select %p32, 0, %s31
      %s34 = sadd.s32 1, %s25
      %s35 = scalar_select %p32, %s34, %s25
      %p36 = scmp.ge.s32.totalorder %s35, 2
      %s37 = scalar_select %p36, 0, %s35
      %s38 = sadd.s32 %s25, %s26
      %s39 = sadd.s32 %s37, %s33
      %s40 = ssub.s32 %s38, %s39
      %p41 = scmp.eq.s32.totalorder %s40, 0
      %s43 = sadd.s32 %s42, 1
      %s44 = scalar_select %p41, %s42, %s43
      %p47 = pneg %p41
      %p48 = scmp.eq.s32.totalorder %s18, 1
      %p49 = por %p47, %p48
      %p50 = scmp.ne.s32.totalorder %s42, %s45
      %p51 = scmp.eq.s32.totalorder %s18, 0
      %p52 = por %p50, %p51
      %p53 = scmp.ne.s32.totalorder %s42, %s45
      %p54 = scmp.eq.s32.totalorder %s23, 1
      %p55 = por %p53, %p54
      %p56 = scmp.ne.s32.totalorder %s45, %s46
      %p57 = scmp.eq.s32.totalorder %s23, 0
      %p58 = por %p56, %p57
      %p59 = scmp.ne.s32.totalorder %s45, %s46
      %p60 = scmp.eq.s32.totalorder %s24, 1
      %p61 = por %p59, %p60
      %p63 = scmp.ne.s32.totalorder %s46, %s62
      %p64 = scmp.eq.s32.totalorder %s24, 0
      %p65 = por %p63, %p64
      %s67 = sadd.s32 %s66, 1
      %p70 = scmp.eq.s32.totalorder %s18, 1
      %p71 = scmp.ne.s32.totalorder %s66, %s68
      %p72 = scmp.eq.s32.totalorder %s18, 0
      %p73 = por %p71, %p72
      %p74 = scmp.ne.s32.totalorder %s66, %s68
      %p75 = scmp.eq.s32.totalorder %s23, 1
      %p76 = por %p74, %p75
      %p77 = scmp.ne.s32.totalorder %s68, %s69
      %p78 = scmp.eq.s32.totalorder %s23, 0
      %p79 = por %p77, %p78
      %p80 = scmp.ne.s32.totalorder %s68, %s69
      %p81 = scmp.eq.s32.totalorder %s24, 1
      %p82 = por %p80, %p81
      %p84 = scmp.ne.s32.totalorder %s69, %s83
      %p85 = scmp.eq.s32.totalorder %s24, 0
      %p86 = por %p84, %p85
      %s88 = sadd.s32 %s87, 1
      %p91 = scmp.eq.s32.totalorder %s18, 1
      %p92 = scmp.ne.s32.totalorder %s87, %s89
      %p93 = scmp.eq.s32.totalorder %s18, 0
      %p94 = por %p92, %p93
      %p95 = scmp.ne.s32.totalorder %s87, %s89
      %p96 = scmp.eq.s32.totalorder %s23, 1
      %p97 = por %p95, %p96
      %p98 = scmp.ne.s32.totalorder %s89, %s90
      %p99 = scmp.eq.s32.totalorder %s23, 0
      %p100 = por %p98, %p99
      %p101 = scmp.ne.s32.totalorder %s89, %s90
      %p102 = scmp.eq.s32.totalorder %s24, 1
      %p103 = por %p101, %p102
      %p105 = scmp.ne.s32.totalorder %s90, %s104
      %p106 = scmp.eq.s32.totalorder %s24, 0
      %p107 = por %p105, %p106
      %s109 = sadd.s32 %s108, 1
      %p112 = scmp.eq.s32.totalorder %s18, 1
      %p113 = scmp.ne.s32.totalorder %s108, %s110
      %p114 = scmp.eq.s32.totalorder %s18, 0
      %p115 = por %p113, %p114
      %p116 = scmp.ne.s32.totalorder %s108, %s110
      %p117 = scmp.eq.s32.totalorder %s23, 1
      %p118 = por %p116, %p117
      %p119 = scmp.ne.s32.totalorder %s110, %s111
      %p120 = scmp.eq.s32.totalorder %s23, 0
      %p121 = por %p119, %p120
      %p122 = scmp.ne.s32.totalorder %s110, %s111
      %p123 = scmp.eq.s32.totalorder %s24, 1
      %p124 = por %p122, %p123
      %p126 = scmp.ne.s32.totalorder %s111, %s125
      %p127 = scmp.eq.s32.totalorder %s24, 0
      %p128 = por %p126, %p127
      %s130 = sadd.s32 %s129, 1
      %p133 = scmp.eq.s32.totalorder %s18, 1
      %p134 = scmp.ne.s32.totalorder %s129, %s131
      %p135 = scmp.eq.s32.totalorder %s18, 0
      %p136 = por %p134, %p135
      %p137 = scmp.ne.s32.totalorder %s129, %s131
      %p138 = scmp.eq.s32.totalorder %s23, 1
      %p139 = por %p137, %p138
      %p140 = scmp.ne.s32.totalorder %s131, %s132
      %p141 = scmp.eq.s32.totalorder %s23, 0
      %p142 = por %p140, %p141
      %p143 = scmp.ne.s32.totalorder %s131, %s132
      %p144 = scmp.eq.s32.totalorder %s24, 1
      %p145 = por %p143, %p144
      %p147 = scmp.ne.s32.totalorder %s132, %s146
      %p148 = scmp.eq.s32.totalorder %s24, 0
      %p149 = por %p147, %p148
      %s150 = ssub.s32 %s25, %s37
      %s151 = ssub.s32 %s26, %s33
      %s152 = sor.u32 %s150, %s151
      %p153 = scmp.eq.s32.totalorder %s152, 0
      %s155 = sadd.s32 %s154, 1
      %s156 = scalar_select %p153, %s154, %s155
      %p159 = pneg %p153
      %p160 = scmp.eq.s32.totalorder %s18, 1
      %p161 = por %p159, %p160
      %p162 = scmp.ne.s32.totalorder %s154, %s157
      %p163 = scmp.eq.s32.totalorder %s18, 0
      %p164 = por %p162, %p163
      %p165 = scmp.ne.s32.totalorder %s154, %s157
      %p166 = scmp.eq.s32.totalorder %s23, 1
      %p167 = por %p165, %p166
      %p168 = scmp.ne.s32.totalorder %s157, %s158
      %p169 = scmp.eq.s32.totalorder %s23, 0
      %p170 = por %p168, %p169
      %p171 = scmp.ne.s32.totalorder %s157, %s158
      %p172 = scmp.eq.s32.totalorder %s24, 1
      %p173 = por %p171, %p172
      %p175 = scmp.ne.s32.totalorder %s158, %s174
      %p176 = scmp.eq.s32.totalorder %s24, 0
      %p177 = por %p175, %p176
      %p178 = scmp.le.s32.totalorder 1, %s18
      %p179 = scmp.lt.s32.totalorder %s18, 3
      %p180 = pnand %p178, %p179
      %p181 = pneg %p180
      // Predicated region
      $region9: #{tpu_custom_call.1} parent=5 // pred_check
        _
      $region10: #{tpu_custom_call.1} parent=5 // pred_check_branch
        %183 = sbr.rel (%p180) target = $region12
      $region11: #{tpu_custom_call.1} parent=5 // pred_region
        %s184 = ssub.s32 %s18, 1
        // Predicated region
        $region13: #{tpu_custom_call.1} parent=11 // pred_check
          %p185 = pneg %p79
        $region14: #{tpu_custom_call.1} parent=11 // pred_check_branch
          %187 = sbr.rel (%p185) target = $region16
        $region15: #{tpu_custom_call.1} parent=11 // pred_region
          %s189 = ssub.s32 576, 576
          %190 = vsyncadd [#allocation6], %s189
          %s191 = sshll.u32 [#allocation5], 4
          %s192 = int_to_ptr.vmem [resolvable:$true] %s191
          %197 = dma.hbm_to_vmem [thread:$0]  %s1, 576, %s192, [#allocation6], 64, 64, 4
        $region16: #{tpu_custom_call.1} parent=11 // pred_fallthru
          _
        // Predicated region
        $region17: #{tpu_custom_call.1} parent=11 // pred_check
          %p198 = pneg %p100
        $region18: #{tpu_custom_call.1} parent=11 // pred_check_branch
          %200 = sbr.rel (%p198) target = $region20
        $region19: #{tpu_custom_call.1} parent=11 // pred_region
          _
        $region20: #{tpu_custom_call.1} parent=11 // pred_fallthru
          _
        // Predicated region
        $region21: #{tpu_custom_call.1} parent=11 // pred_check
          %p201 = pneg %p121
        $region22: #{tpu_custom_call.1} parent=11 // pred_check_branch
          %203 = sbr.rel (%p201) target = $region24
        $region23: #{tpu_custom_call.1} parent=11 // pred_region
          _
        $region24: #{tpu_custom_call.1} parent=11 // pred_fallthru
          _
        // Predicated region
        $region25: #{tpu_custom_call.1} parent=11 // pred_check
          %p204 = pneg %p142
        $region26: #{tpu_custom_call.1} parent=11 // pred_check_branch
          %206 = sbr.rel (%p204) target = $region28
        $region27: #{tpu_custom_call.1} parent=11 // pred_region
          _
        $region28: #{tpu_custom_call.1} parent=11 // pred_fallthru
          _
      $region12: #{tpu_custom_call.1} parent=5 // pred_fallthru
        _
      %p207 = scmp.lt.s32.totalorder %s18, 2
      // Predicated region
      $region29: #{tpu_custom_call.1} parent=5 // pred_check
        %p208 = pneg %p207
      $region30: #{tpu_custom_call.1} parent=5 // pred_check_branch
        %210 = sbr.rel (%p208) target = $region32
      $region31: #{tpu_custom_call.1} parent=5 // pred_region
        // Predicated region
        $region33: #{tpu_custom_call.1} parent=31 // pred_check
          %p211 = pneg %p52
        $region34: #{tpu_custom_call.1} parent=31 // pred_check_branch
          %213 = sbr.rel (%p211) target = $region36
        $region35: #{tpu_custom_call.1} parent=31 // pred_region
          %s214 = sand.u32 %s42, 1
          %s215 = scalar_lea.sflag [#allocation3], %s214
          %s216 = sand.u32 %s42, 1
          %s217 = smul.addr %s216, 64
          %s218 = scalar_lea.vmem [#allocation2], %s217
          %s219 = sadd.s32 %s25, %s26
          %s221 = ssub.s32 1024, 1024
          %222 = vsyncadd %s215, %s221
          %s223 = smul.addr %s219, 8
          %s224 = smul.addr %s223, 128
          %s225 = scalar_lea.hbm %s0, %s224
          %s226 = sshll.u32 %s218, 4
          %s227 = int_to_ptr.vmem [resolvable:$true] %s226
          %232 = dma.hbm_to_vmem [thread:$0]  %s225, 1024, %s227, %s215, 512, 512, 32
        $region36: #{tpu_custom_call.1} parent=31 // pred_fallthru
          _
      $region32: #{tpu_custom_call.1} parent=5 // pred_fallthru
        _
      %p233 = scmp.le.s32.totalorder 1, %s18
      %p234 = scmp.lt.s32.totalorder %s18, 3
      %p235 = pnand %p233, %p234
      %p236 = pneg %p235
      // Predicated region
      $region37: #{tpu_custom_call.1} parent=5 // pred_check
        _
      $region38: #{tpu_custom_call.1} parent=5 // pred_check_branch
        %238 = sbr.rel (%p235) target = $region40
      $region39: #{tpu_custom_call.1} parent=5 // pred_region
        %s239 = ssub.s32 %s18, 1
        %s240 = sand.u32 %s45, 1
        %s241 = scalar_lea.sflag [#allocation3], %s240
        %s242 = sand.u32 %s45, 1
        %s243 = smul.addr %s242, 64
        %s244 = scalar_lea.vmem [#allocation2], %s243
        // Predicated region
        $region41: #{tpu_custom_call.1} parent=39 // pred_check
          %p245 = pneg %p58
        $region42: #{tpu_custom_call.1} parent=39 // pred_check_branch
          %247 = sbr.rel (%p245) target = $region44
        $region43: #{tpu_custom_call.1} parent=39 // pred_region
          %248 = dma.done %s241, 1024
        $region44: #{tpu_custom_call.1} parent=39 // pred_fallthru
          _
        // Predicated region
        $region45: #{tpu_custom_call.1} parent=39 // pred_check
          %p249 = pneg %p79
        $region46: #{tpu_custom_call.1} parent=39 // pred_check_branch
          %251 = sbr.rel (%p249) target = $region48
        $region47: #{tpu_custom_call.1} parent=39 // pred_region
          %252 = dma.done [#allocation6], 576
        $region48: #{tpu_custom_call.1} parent=39 // pred_fallthru
          _
        %s253 = sand.u32 %s45, 1
        %s254 = scalar_lea.sflag [#allocation3], %s253
        %s255 = sand.u32 %s45, 1
        %s256 = smul.addr %s255, 64
        %s257 = scalar_lea.vmem [#allocation2], %s256
        %p258 = pneg %p58
        %p259 = pneg %p55
        %p260 = pneg %p79
        %p261 = pneg %p76
        %p262 = pneg %p100
        %p263 = pneg %p97
        %p264 = pneg %p121
        %p265 = pneg %p118
        %p266 = pneg %p142
        %p267 = pneg %p139
        %p268 = pneg %p170
        %p269 = pneg %p167
        %s270 = sand.u32 %s157, 1
        %s271 = scalar_lea.sflag [#allocation4], %s270
        %s272 = sand.u32 %s157, 1
        %s273 = smul.addr %s272, 6
        %s274 = scalar_lea.vmem [#allocation7], %s273
        %s275 = sadd.s32 %s27, %s28
        %s276 = smul.u32 3, %s28
        %v277 = vld [vmem:[%s244] sm:$0xff]
        %v278 = vld [vmem:[%s244 + $0x8] sm:$0xff]
        %v279 = vld [vmem:[%s244 + $0x10] sm:$0xff]
        %v280 = vld [vmem:[%s244 + $0x18] sm:$0xff]
        %v281 = vld [vmem:[%s244 + $0x20] sm:$0xff]
        %v282 = vld [vmem:[%s244 + $0x28] sm:$0xff]
        %v283 = vld [vmem:[%s244 + $0x30] sm:$0xff]
        %v284 = vld [vmem:[%s244 + $0x38] sm:$0xff]
        %v285 = vld [vmem:[#allocation5] sm:$0xf]
        %vm286 = vcmask 130048
        %v288 = vsel %vm286, %v285, 0
        %290 = vmatprep.subr.mxu0 0.0
        %291 = vmatpush1.msra.mxu0 0.0
        %292 = vmatprep.subr.mxu0 0.0
        %293 = vmatpush1.msra.mxu0 0.0
        %294 = vmatprep.subr.mxu0 0.0
        %295 = vmatpush1.msra.mxu0 0.0
        %296 = vmatprep.subr.mxu0 0.0
        %297 = vmatpush1.msra.mxu0 0.0
        %298 = vmatprep.subr.mxu0 0.0
        %299 = vmatpush1.msra.mxu0 0.0
        %300 = vmatprep.subr.mxu0 0.0
        %301 = vmatpush1.msra.mxu0 0.0
        %302 = vmatprep.subr.mxu0 0.0
        %303 = vmatpush1.msra.mxu0 0.0
        %304 = vmatprep.subr.mxu0 0.0
        %305 = vmatpush1.msra.mxu0 0.0
        %306 = vmatprep.subr.mxu0 0.0
        %307 = vmatpush1.msra.mxu0 0.0
        %308 = vmatprep.subr.mxu0 0.0
        %309 = vmatpush1.msra.mxu0 0.0
        %310 = vmatprep.subr.mxu0 0.0
        %311 = vmatpush1.msra.mxu0 0.0
        %312 = vmatprep.subr.mxu0 0.0
        %313 = vmatpush1.msra.mxu0 0.0
        %314 = vmatprep.subr.mxu0 0.0
        %315 = vmatpush1.msra.mxu0 0.0
        %316 = vmatprep.subr.mxu0 0.0
        %317 = vmatpush1.msra.mxu0 0.0
        %318 = vmatprep.subr.mxu0 %v282
        %319 = vmatpush1.msra.mxu0 %v281
        %320 = vmatprep.subr.mxu0 %v278
        %321 = vmatpush1.msra.mxu0 %v277
        %322 = vmatprep.subr.mxu0 0.0
        %323 = vmatpush2.msra.mxu0 0.0
        %324 = vmatprep.subr.mxu0 0.0
        %325 = vmatpush2.msra.mxu0 0.0
        %326 = vmatprep.subr.mxu0 0.0
        %327 = vmatpush2.msra.mxu0 0.0
        %328 = vmatprep.subr.mxu0 0.0
        %329 = vmatpush2.msra.mxu0 0.0
        %330 = vmatprep.subr.mxu0 0.0
        %331 = vmatpush2.msra.mxu0 0.0
        %332 = vmatprep.subr.mxu0 0.0
        %333 = vmatpush2.msra.mxu0 0.0
        %334 = vmatprep.subr.mxu0 0.0
        %335 = vmatpush2.msra.mxu0 0.0
        %336 = vmatprep.subr.mxu0 0.0
        %337 = vmatpush2.msra.mxu0 0.0
        %338 = vmatprep.subr.mxu0 0.0
        %339 = vmatpush2.msra.mxu0 0.0
        %340 = vmatprep.subr.mxu0 0.0
        %341 = vmatpush2.msra.mxu0 0.0
        %342 = vmatprep.subr.mxu0 0.0
        %343 = vmatpush2.msra.mxu0 0.0
        %344 = vmatprep.subr.mxu0 0.0
        %345 = vmatpush2.msra.mxu0 0.0
        %346 = vmatprep.subr.mxu0 0.0
        %347 = vmatpush2.msra.mxu0 0.0
        %348 = vmatprep.subr.mxu0 0.0
        %349 = vmatpush2.msra.mxu0 0.0
        %350 = vmatprep.subr.mxu0 0.0
        %351 = vmatpush2.msra.mxu0 0.0
        %352 = vmatprep.subr.mxu0 0.0
        %353 = vmatpush2.msra.mxu0 0.0
        %354 = vmatprep.mubr.f32.mxu0 0.0
        %355 = vmatmul.mubr.f32.gmra.mxu0 %v288
        %v356 = vpop.f32.mrf.mxu0
        %v357 = vadd.f32 0.0, %v356
        %v358 = vpop.f32.mrf.mxu0
        %v359 = vadd.f32 0.0, %v358
        %360 = vdwg.mxu0
        %361 = vmatprep.subr.mxu0 0.0
        %362 = vmatpush1.msra.mxu0 0.0
        %363 = vmatprep.subr.mxu0 0.0
        %364 = vmatpush1.msra.mxu0 0.0
        %365 = vmatprep.subr.mxu0 0.0
        %366 = vmatpush1.msra.mxu0 0.0
        %367 = vmatprep.subr.mxu0 0.0
        %368 = vmatpush1.msra.mxu0 0.0
        %369 = vmatprep.subr.mxu0 0.0
        %370 = vmatpush1.msra.mxu0 0.0
        %371 = vmatprep.subr.mxu0 0.0
        %372 = vmatpush1.msra.mxu0 0.0
        %373 = vmatprep.subr.mxu0 0.0
        %374 = vmatpush1.msra.mxu0 0.0
        %375 = vmatprep.subr.mxu0 0.0
        %376 = vmatpush1.msra.mxu0 0.0
        %377 = vmatprep.subr.mxu0 0.0
        %378 = vmatpush1.msra.mxu0 0.0
        %379 = vmatprep.subr.mxu0 0.0
        %380 = vmatpush1.msra.mxu0 0.0
        %381 = vmatprep.subr.mxu0 0.0
        %382 = vmatpush1.msra.mxu0 0.0
        %383 = vmatprep.subr.mxu0 0.0
        %384 = vmatpush1.msra.mxu0 0.0
        %385 = vmatprep.subr.mxu0 0.0
        %386 = vmatpush1.msra.mxu0 0.0
        %387 = vmatprep.subr.mxu0 0.0
        %388 = vmatpush1.msra.mxu0 0.0
        %389 = vmatprep.subr.mxu0 %v284
        %390 = vmatpush1.msra.mxu0 %v283
        %391 = vmatprep.subr.mxu0 %v280
        %392 = vmatpush1.msra.mxu0 %v279
        %393 = vmatprep.subr.mxu0 0.0
        %394 = vmatpush2.msra.mxu0 0.0
        %395 = vmatprep.subr.mxu0 0.0
        %396 = vmatpush2.msra.mxu0 0.0
        %397 = vmatprep.subr.mxu0 0.0
        %398 = vmatpush2.msra.mxu0 0.0
        %399 = vmatprep.subr.mxu0 0.0
        %400 = vmatpush2.msra.mxu0 0.0
        %401 = vmatprep.subr.mxu0 0.0
        %402 = vmatpush2.msra.mxu0 0.0
        %403 = vmatprep.subr.mxu0 0.0
        %404 = vmatpush2.msra.mxu0 0.0
        %405 = vmatprep.subr.mxu0 0.0
        %406 = vmatpush2.msra.mxu0 0.0
        %407 = vmatprep.subr.mxu0 0.0
        %408 = vmatpush2.msra.mxu0 0.0
        %409 = vmatprep.subr.mxu0 0.0
        %410 = vmatpush2.msra.mxu0 0.0
        %411 = vmatprep.subr.mxu0 0.0
        %412 = vmatpush2.msra.mxu0 0.0
        %413 = vmatprep.subr.mxu0 0.0
        %414 = vmatpush2.msra.mxu0 0.0
        %415 = vmatprep.subr.mxu0 0.0
        %416 = vmatpush2.msra.mxu0 0.0
        %417 = vmatprep.subr.mxu0 0.0
        %418 = vmatpush2.msra.mxu0 0.0
        %419 = vmatprep.subr.mxu0 0.0
        %420 = vmatpush2.msra.mxu0 0.0
        %421 = vmatprep.subr.mxu0 0.0
        %422 = vmatpush2.msra.mxu0 0.0
        %423 = vmatprep.subr.mxu0 0.0
        %424 = vmatpush2.msra.mxu0 0.0
        %425 = vmatprep.mubr.f32.mxu0 0.0
        %426 = vmatmul.mubr.f32.gmra.mxu0 %v288
        %v427 = vpop.f32.mrf.mxu0
        %v428 = vadd.f32 0.0, %v427
        %v429 = vpop.f32.mrf.mxu0
        %430 = vdwg.mxu0
        %s431 = scalar_lea.vmem [#allocation5], 4
        %v432 = vld [vmem:[%s431] sm:$0xf]
        %v434 = vsel %vm286, %v432, 0
        %436 = vmatprep.subr.mxu0 0.0
        %437 = vmatpush1.msra.mxu0 0.0
        %438 = vmatprep.subr.mxu0 0.0
        %439 = vmatpush1.msra.mxu0 0.0
        %440 = vmatprep.subr.mxu0 0.0
        %441 = vmatpush1.msra.mxu0 0.0
        %442 = vmatprep.subr.mxu0 0.0
        %443 = vmatpush1.msra.mxu0 0.0
        %444 = vmatprep.subr.mxu0 0.0
        %445 = vmatpush1.msra.mxu0 0.0
        %446 = vmatprep.subr.mxu0 0.0
        %447 = vmatpush1.msra.mxu0 0.0
        %448 = vmatprep.subr.mxu0 0.0
        %449 = vmatpush1.msra.mxu0 0.0
        %450 = vmatprep.subr.mxu0 0.0
        %451 = vmatpush1.msra.mxu0 0.0
        %452 = vmatprep.subr.mxu0 0.0
        %453 = vmatpush1.msra.mxu0 0.0
        %454 = vmatprep.subr.mxu0 0.0
        %455 = vmatpush1.msra.mxu0 0.0
        %456 = vmatprep.subr.mxu0 0.0
        %457 = vmatpush1.msra.mxu0 0.0
        %458 = vmatprep.subr.mxu0 0.0
        %459 = vmatpush1.msra.mxu0 0.0
        %460 = vmatprep.subr.mxu0 0.0
        %461 = vmatpush1.msra.mxu0 0.0
        %462 = vmatprep.subr.mxu0 0.0
        %463 = vmatpush1.msra.mxu0 0.0
        %464 = vmatprep.subr.mxu0 %v282
        %465 = vmatpush1.msra.mxu0 %v281
        %466 = vmatprep.subr.mxu0 %v278
        %467 = vmatpush1.msra.mxu0 %v277
        %468 = vmatprep.subr.mxu0 0.0
        %469 = vmatpush2.msra.mxu0 0.0
        %470 = vmatprep.subr.mxu0 0.0
        %471 = vmatpush2.msra.mxu0 0.0
        %472 = vmatprep.subr.mxu0 0.0
        %473 = vmatpush2.msra.mxu0 0.0
        %474 = vmatprep.subr.mxu0 0.0
        %475 = vmatpush2.msra.mxu0 0.0
        %476 = vmatprep.subr.mxu0 0.0
        %477 = vmatpush2.msra.mxu0 0.0
        %478 = vmatprep.subr.mxu0 0.0
        %479 = vmatpush2.msra.mxu0 0.0
        %480 = vmatprep.subr.mxu0 0.0
        %481 = vmatpush2.msra.mxu0 0.0
        %482 = vmatprep.subr.mxu0 0.0
        %483 = vmatpush2.msra.mxu0 0.0
        %484 = vmatprep.subr.mxu0 0.0
        %485 = vmatpush2.msra.mxu0 0.0
        %486 = vmatprep.subr.mxu0 0.0
        %487 = vmatpush2.msra.mxu0 0.0
        %488 = vmatprep.subr.mxu0 0.0
        %489 = vmatpush2.msra.mxu0 0.0
        %490 = vmatprep.subr.mxu0 0.0
        %491 = vmatpush2.msra.mxu0 0.0
        %492 = vmatprep.subr.mxu0 0.0
        %493 = vmatpush2.msra.mxu0 0.0
        %494 = vmatprep.subr.mxu0 0.0
        %495 = vmatpush2.msra.mxu0 0.0
        %496 = vmatprep.subr.mxu0 0.0
        %497 = vmatpush2.msra.mxu0 0.0
        %498 = vmatprep.subr.mxu0 0.0
        %499 = vmatpush2.msra.mxu0 0.0
        %500 = vmatprep.mubr.f32.mxu0 0.0
        %501 = vmatmul.mubr.f32.gmra.mxu0 %v434
        %v502 = vpop.f32.mrf.mxu0
        %v503 = vadd.f32 0.0, %v502
        %v504 = vpop.f32.mrf.mxu0
        %v505 = vadd.f32 0.0, %v504
        %506 = vdwg.mxu0
        %507 = vmatprep.subr.mxu0 0.0
        %508 = vmatpush1.msra.mxu0 0.0
        %509 = vmatprep.subr.mxu0 0.0
        %510 = vmatpush1.msra.mxu0 0.0
        %511 = vmatprep.subr.mxu0 0.0
        %512 = vmatpush1.msra.mxu0 0.0
        %513 = vmatprep.subr.mxu0 0.0
        %514 = vmatpush1.msra.mxu0 0.0
        %515 = vmatprep.subr.mxu0 0.0
        %516 = vmatpush1.msra.mxu0 0.0
        %517 = vmatprep.subr.mxu0 0.0
        %518 = vmatpush1.msra.mxu0 0.0
        %519 = vmatprep.subr.mxu0 0.0
        %520 = vmatpush1.msra.mxu0 0.0
        %521 = vmatprep.subr.mxu0 0.0
        %522 = vmatpush1.msra.mxu0 0.0
        %523 = vmatprep.subr.mxu0 0.0
        %524 = vmatpush1.msra.mxu0 0.0
        %525 = vmatprep.subr.mxu0 0.0
        %526 = vmatpush1.msra.mxu0 0.0
        %527 = vmatprep.subr.mxu0 0.0
        %528 = vmatpush1.msra.mxu0 0.0
        %529 = vmatprep.subr.mxu0 0.0
        %530 = vmatpush1.msra.mxu0 0.0
        %531 = vmatprep.subr.mxu0 0.0
        %532 = vmatpush1.msra.mxu0 0.0
        %533 = vmatprep.subr.mxu0 0.0
        %534 = vmatpush1.msra.mxu0 0.0
        %535 = vmatprep.subr.mxu0 %v284
        %536 = vmatpush1.msra.mxu0 %v283
        %537 = vmatprep.subr.mxu0 %v280
        %538 = vmatpush1.msra.mxu0 %v279
        %539 = vmatprep.subr.mxu0 0.0
        %540 = vmatpush2.msra.mxu0 0.0
        %541 = vmatprep.subr.mxu0 0.0
        %542 = vmatpush2.msra.mxu0 0.0
        %543 = vmatprep.subr.mxu0 0.0
        %544 = vmatpush2.msra.mxu0 0.0
        %545 = vmatprep.subr.mxu0 0.0
        %546 = vmatpush2.msra.mxu0 0.0
        %547 = vmatprep.subr.mxu0 0.0
        %548 = vmatpush2.msra.mxu0 0.0
        %549 = vmatprep.subr.mxu0 0.0
        %550 = vmatpush2.msra.mxu0 0.0
        %551 = vmatprep.subr.mxu0 0.0
        %552 = vmatpush2.msra.mxu0 0.0
        %553 = vmatprep.subr.mxu0 0.0
        %554 = vmatpush2.msra.mxu0 0.0
        %555 = vmatprep.subr.mxu0 0.0
        %556 = vmatpush2.msra.mxu0 0.0
        %557 = vmatprep.subr.mxu0 0.0
        %558 = vmatpush2.msra.mxu0 0.0
        %559 = vmatprep.subr.mxu0 0.0
        %560 = vmatpush2.msra.mxu0 0.0
        %561 = vmatprep.subr.mxu0 0.0
        %562 = vmatpush2.msra.mxu0 0.0
        %563 = vmatprep.subr.mxu0 0.0
        %564 = vmatpush2.msra.mxu0 0.0
        %565 = vmatprep.subr.mxu0 0.0
        %566 = vmatpush2.msra.mxu0 0.0
        %567 = vmatprep.subr.mxu0 0.0
        %568 = vmatpush2.msra.mxu0 0.0
        %569 = vmatprep.subr.mxu0 0.0
        %570 = vmatpush2.msra.mxu0 0.0
        %571 = vmatprep.mubr.f32.mxu0 0.0
        %572 = vmatmul.mubr.f32.gmra.mxu0 %v434
        %v573 = vpop.f32.mrf.mxu0
        %v574 = vadd.f32 0.0, %v573
        %v575 = vpop.f32.mrf.mxu0
        %v576 = vadd.f32 0.0, %v575
        %577 = vdwg.mxu0
        %582 = vrot.lane.b32.xlu0 %v503, 127
        %v583 = vpop.permute.xlu0 %582
        %584 = vrot.lane.b32.xlu0 %v505, 127
        %v585 = vpop.permute.xlu0 %584
        %586 = vrot.lane.b32.xlu0 %v574, 127
        %v587 = vpop.permute.xlu0 %586
        %588 = vrot.lane.b32.xlu0 %v576, 127
        %v589 = vpop.permute.xlu0 %588
        %vm590 = vcmask 1039360
        %v591 = vsel %vm590, %v583, %v585
        %v592 = vsel %vm590, %v585, %v587
        %v593 = vsel %vm590, %v587, %v589
        %v597 = vadd.f32 %v357, %v591
        %v598 = vadd.f32 %v359, %v592
        %v599 = vadd.f32 %v428, %v593
        %s600 = scalar_lea.vmem [#allocation5], 8
        %v601 = vld [vmem:[%s600] sm:$0xf]
        %v603 = vsel %vm286, %v601, 0
        %605 = vmatprep.subr.mxu0 0.0
        %606 = vmatpush1.msra.mxu0 0.0
        %607 = vmatprep.subr.mxu0 0.0
        %608 = vmatpush1.msra.mxu0 0.0
        %609 = vmatprep.subr.mxu0 0.0
        %610 = vmatpush1.msra.mxu0 0.0
        %611 = vmatprep.subr.mxu0 0.0
        %612 = vmatpush1.msra.mxu0 0.0
        %613 = vmatprep.subr.mxu0 0.0
        %614 = vmatpush1.msra.mxu0 0.0
        %615 = vmatprep.subr.mxu0 0.0
        %616 = vmatpush1.msra.mxu0 0.0
        %617 = vmatprep.subr.mxu0 0.0
        %618 = vmatpush1.msra.mxu0 0.0
        %619 = vmatprep.subr.mxu0 0.0
        %620 = vmatpush1.msra.mxu0 0.0
        %621 = vmatprep.subr.mxu0 0.0
        %622 = vmatpush1.msra.mxu0 0.0
        %623 = vmatprep.subr.mxu0 0.0
        %624 = vmatpush1.msra.mxu0 0.0
        %625 = vmatprep.subr.mxu0 0.0
        %626 = vmatpush1.msra.mxu0 0.0
        %627 = vmatprep.subr.mxu0 0.0
        %628 = vmatpush1.msra.mxu0 0.0
        %629 = vmatprep.subr.mxu0 0.0
        %630 = vmatpush1.msra.mxu0 0.0
        %631 = vmatprep.subr.mxu0 0.0
        %632 = vmatpush1.msra.mxu0 0.0
        %633 = vmatprep.subr.mxu0 %v282
        %634 = vmatpush1.msra.mxu0 %v281
        %635 = vmatprep.subr.mxu0 %v278
        %636 = vmatpush1.msra.mxu0 %v277
        %637 = vmatprep.subr.mxu0 0.0
        %638 = vmatpush2.msra.mxu0 0.0
        %639 = vmatprep.subr.mxu0 0.0
        %640 = vmatpush2.msra.mxu0 0.0
        %641 = vmatprep.subr.mxu0 0.0
        %642 = vmatpush2.msra.mxu0 0.0
        %643 = vmatprep.subr.mxu0 0.0
        %644 = vmatpush2.msra.mxu0 0.0
        %645 = vmatprep.subr.mxu0 0.0
        %646 = vmatpush2.msra.mxu0 0.0
        %647 = vmatprep.subr.mxu0 0.0
        %648 = vmatpush2.msra.mxu0 0.0
        %649 = vmatprep.subr.mxu0 0.0
        %650 = vmatpush2.msra.mxu0 0.0
        %651 = vmatprep.subr.mxu0 0.0
        %652 = vmatpush2.msra.mxu0 0.0
        %653 = vmatprep.subr.mxu0 0.0
        %654 = vmatpush2.msra.mxu0 0.0
        %655 = vmatprep.subr.mxu0 0.0
        %656 = vmatpush2.msra.mxu0 0.0
        %657 = vmatprep.subr.mxu0 0.0
        %658 = vmatpush2.msra.mxu0 0.0
        %659 = vmatprep.subr.mxu0 0.0
        %660 = vmatpush2.msra.mxu0 0.0
        %661 = vmatprep.subr.mxu0 0.0
        %662 = vmatpush2.msra.mxu0 0.0
        %663 = vmatprep.subr.mxu0 0.0
        %664 = vmatpush2.msra.mxu0 0.0
        %665 = vmatprep.subr.mxu0 0.0
        %666 = vmatpush2.msra.mxu0 0.0
        %667 = vmatprep.subr.mxu0 0.0
        %668 = vmatpush2.msra.mxu0 0.0
        %669 = vmatprep.mubr.f32.mxu0 0.0
        %670 = vmatmul.mubr.f32.gmra.mxu0 %v603
        %v671 = vpop.f32.mrf.mxu0
        %v672 = vadd.f32 0.0, %v671
        %v673 = vpop.f32.mrf.mxu0
        %v674 = vadd.f32 0.0, %v673
        %675 = vdwg.mxu0
        %676 = vmatprep.subr.mxu0 0.0
        %677 = vmatpush1.msra.mxu0 0.0
        %678 = vmatprep.subr.mxu0 0.0
        %679 = vmatpush1.msra.mxu0 0.0
        %680 = vmatprep.subr.mxu0 0.0
        %681 = vmatpush1.msra.mxu0 0.0
        %682 = vmatprep.subr.mxu0 0.0
        %683 = vmatpush1.msra.mxu0 0.0
        %684 = vmatprep.subr.mxu0 0.0
        %685 = vmatpush1.msra.mxu0 0.0
        %686 = vmatprep.subr.mxu0 0.0
        %687 = vmatpush1.msra.mxu0 0.0
        %688 = vmatprep.subr.mxu0 0.0
        %689 = vmatpush1.msra.mxu0 0.0
        %690 = vmatprep.subr.mxu0 0.0
        %691 = vmatpush1.msra.mxu0 0.0
        %692 = vmatprep.subr.mxu0 0.0
        %693 = vmatpush1.msra.mxu0 0.0
        %694 = vmatprep.subr.mxu0 0.0
        %695 = vmatpush1.msra.mxu0 0.0
        %696 = vmatprep.subr.mxu0 0.0
        %697 = vmatpush1.msra.mxu0 0.0
        %698 = vmatprep.subr.mxu0 0.0
        %699 = vmatpush1.msra.mxu0 0.0
        %700 = vmatprep.subr.mxu0 0.0
        %701 = vmatpush1.msra.mxu0 0.0
        %702 = vmatprep.subr.mxu0 0.0
        %703 = vmatpush1.msra.mxu0 0.0
        %704 = vmatprep.subr.mxu0 %v284
        %705 = vmatpush1.msra.mxu0 %v283
        %706 = vmatprep.subr.mxu0 %v280
        %707 = vmatpush1.msra.mxu0 %v279
        %708 = vmatprep.subr.mxu0 0.0
        %709 = vmatpush2.msra.mxu0 0.0
        %710 = vmatprep.subr.mxu0 0.0
        %711 = vmatpush2.msra.mxu0 0.0
        %712 = vmatprep.subr.mxu0 0.0
        %713 = vmatpush2.msra.mxu0 0.0
        %714 = vmatprep.subr.mxu0 0.0
        %715 = vmatpush2.msra.mxu0 0.0
        %716 = vmatprep.subr.mxu0 0.0
        %717 = vmatpush2.msra.mxu0 0.0
        %718 = vmatprep.subr.mxu0 0.0
        %719 = vmatpush2.msra.mxu0 0.0
        %720 = vmatprep.subr.mxu0 0.0
        %721 = vmatpush2.msra.mxu0 0.0
        %722 = vmatprep.subr.mxu0 0.0
        %723 = vmatpush2.msra.mxu0 0.0
        %724 = vmatprep.subr.mxu0 0.0
        %725 = vmatpush2.msra.mxu0 0.0
        %726 = vmatprep.subr.mxu0 0.0
        %727 = vmatpush2.msra.mxu0 0.0
        %728 = vmatprep.subr.mxu0 0.0
        %729 = vmatpush2.msra.mxu0 0.0
        %730 = vmatprep.subr.mxu0 0.0
        %731 = vmatpush2.msra.mxu0 0.0
        %732 = vmatprep.subr.mxu0 0.0
        %733 = vmatpush2.msra.mxu0 0.0
        %734 = vmatprep.subr.mxu0 0.0
        %735 = vmatpush2.msra.mxu0 0.0
        %736 = vmatprep.subr.mxu0 0.0
        %737 = vmatpush2.msra.mxu0 0.0
        %738 = vmatprep.subr.mxu0 0.0
        %739 = vmatpush2.msra.mxu0 0.0
        %740 = vmatprep.mubr.f32.mxu0 0.0
        %741 = vmatmul.mubr.f32.gmra.mxu0 %v603
        %v742 = vpop.f32.mrf.mxu0
        %v743 = vadd.f32 0.0, %v742
        %v744 = vpop.f32.mrf.mxu0
        %v745 = vadd.f32 0.0, %v744
        %746 = vdwg.mxu0
        %751 = vrot.lane.b32.xlu0 %v672, 126
        %v752 = vpop.permute.xlu0 %751
        %753 = vrot.lane.b32.xlu0 %v674, 126
        %v754 = vpop.permute.xlu0 %753
        %755 = vrot.lane.b32.xlu0 %v743, 126
        %v756 = vpop.permute.xlu0 %755
        %757 = vrot.lane.b32.xlu0 %v745, 126
        %v758 = vpop.permute.xlu0 %757
        %vm759 = vcmask 1031168
        %v760 = vsel %vm759, %v752, %v754
        %v761 = vsel %vm759, %v754, %v756
        %v762 = vsel %vm759, %v756, %v758
        %v766 = vadd.f32 %v597, %v760
        %v767 = vadd.f32 %v598, %v761
        %v768 = vadd.f32 %v599, %v762
        %s769 = scalar_lea.vmem [#allocation5], 12
        %v770 = vld [vmem:[%s769] sm:$0xf]
        %v772 = vsel %vm286, %v770, 0
        %774 = vmatprep.subr.mxu0 0.0
        %775 = vmatpush1.msra.mxu0 0.0
        %776 = vmatprep.subr.mxu0 0.0
        %777 = vmatpush1.msra.mxu0 0.0
        %778 = vmatprep.subr.mxu0 0.0
        %779 = vmatpush1.msra.mxu0 0.0
        %780 = vmatprep.subr.mxu0 0.0
        %781 = vmatpush1.msra.mxu0 0.0
        %782 = vmatprep.subr.mxu0 0.0
        %783 = vmatpush1.msra.mxu0 0.0
        %784 = vmatprep.subr.mxu0 0.0
        %785 = vmatpush1.msra.mxu0 0.0
        %786 = vmatprep.subr.mxu0 0.0
        %787 = vmatpush1.msra.mxu0 0.0
        %788 = vmatprep.subr.mxu0 0.0
        %789 = vmatpush1.msra.mxu0 0.0
        %790 = vmatprep.subr.mxu0 0.0
        %791 = vmatpush1.msra.mxu0 0.0
        %792 = vmatprep.subr.mxu0 0.0
        %793 = vmatpush1.msra.mxu0 0.0
        %794 = vmatprep.subr.mxu0 0.0
        %795 = vmatpush1.msra.mxu0 0.0
        %796 = vmatprep.subr.mxu0 0.0
        %797 = vmatpush1.msra.mxu0 0.0
        %798 = vmatprep.subr.mxu0 0.0
        %799 = vmatpush1.msra.mxu0 0.0
        %800 = vmatprep.subr.mxu0 0.0
        %801 = vmatpush1.msra.mxu0 0.0
        %802 = vmatprep.subr.mxu0 %v282
        %803 = vmatpush1.msra.mxu0 %v281
        %804 = vmatprep.subr.mxu0 %v278
        %805 = vmatpush1.msra.mxu0 %v277
        %806 = vmatprep.subr.mxu0 0.0
        %807 = vmatpush2.msra.mxu0 0.0
        %808 = vmatprep.subr.mxu0 0.0
        %809 = vmatpush2.msra.mxu0 0.0
        %810 = vmatprep.subr.mxu0 0.0
        %811 = vmatpush2.msra.mxu0 0.0
        %812 = vmatprep.subr.mxu0 0.0
        %813 = vmatpush2.msra.mxu0 0.0
        %814 = vmatprep.subr.mxu0 0.0
        %815 = vmatpush2.msra.mxu0 0.0
        %816 = vmatprep.subr.mxu0 0.0
        %817 = vmatpush2.msra.mxu0 0.0
        %818 = vmatprep.subr.mxu0 0.0
        %819 = vmatpush2.msra.mxu0 0.0
        %820 = vmatprep.subr.mxu0 0.0
        %821 = vmatpush2.msra.mxu0 0.0
        %822 = vmatprep.subr.mxu0 0.0
        %823 = vmatpush2.msra.mxu0 0.0
        %824 = vmatprep.subr.mxu0 0.0
        %825 = vmatpush2.msra.mxu0 0.0
        %826 = vmatprep.subr.mxu0 0.0
        %827 = vmatpush2.msra.mxu0 0.0
        %828 = vmatprep.subr.mxu0 0.0
        %829 = vmatpush2.msra.mxu0 0.0
        %830 = vmatprep.subr.mxu0 0.0
        %831 = vmatpush2.msra.mxu0 0.0
        %832 = vmatprep.subr.mxu0 0.0
        %833 = vmatpush2.msra.mxu0 0.0
        %834 = vmatprep.subr.mxu0 0.0
        %835 = vmatpush2.msra.mxu0 0.0
        %836 = vmatprep.subr.mxu0 0.0
        %837 = vmatpush2.msra.mxu0 0.0
        %838 = vmatprep.mubr.f32.mxu0 0.0
        %839 = vmatmul.mubr.f32.gmra.mxu0 %v772
        %v840 = vpop.f32.mrf.mxu0
        %v841 = vadd.f32 0.0, %v840
        %v842 = vpop.f32.mrf.mxu0
        %v843 = vadd.f32 0.0, %v842
        %844 = vdwg.mxu0
        %845 = vmatprep.subr.mxu0 0.0
        %846 = vmatpush1.msra.mxu0 0.0
        %847 = vmatprep.subr.mxu0 0.0
        %848 = vmatpush1.msra.mxu0 0.0
        %849 = vmatprep.subr.mxu0 0.0
        %850 = vmatpush1.msra.mxu0 0.0
        %851 = vmatprep.subr.mxu0 0.0
        %852 = vmatpush1.msra.mxu0 0.0
        %853 = vmatprep.subr.mxu0 0.0
        %854 = vmatpush1.msra.mxu0 0.0
        %855 = vmatprep.subr.mxu0 0.0
        %856 = vmatpush1.msra.mxu0 0.0
        %857 = vmatprep.subr.mxu0 0.0
        %858 = vmatpush1.msra.mxu0 0.0
        %859 = vmatprep.subr.mxu0 0.0
        %860 = vmatpush1.msra.mxu0 0.0
        %861 = vmatprep.subr.mxu0 0.0
        %862 = vmatpush1.msra.mxu0 0.0
        %863 = vmatprep.subr.mxu0 0.0
        %864 = vmatpush1.msra.mxu0 0.0
        %865 = vmatprep.subr.mxu0 0.0
        %866 = vmatpush1.msra.mxu0 0.0
        %867 = vmatprep.subr.mxu0 0.0
        %868 = vmatpush1.msra.mxu0 0.0
        %869 = vmatprep.subr.mxu0 0.0
        %870 = vmatpush1.msra.mxu0 0.0
        %871 = vmatprep.subr.mxu0 0.0
        %872 = vmatpush1.msra.mxu0 0.0
        %873 = vmatprep.subr.mxu0 %v284
        %874 = vmatpush1.msra.mxu0 %v283
        %875 = vmatprep.subr.mxu0 %v280
        %876 = vmatpush1.msra.mxu0 %v279
        %877 = vmatprep.subr.mxu0 0.0
        %878 = vmatpush2.msra.mxu0 0.0
        %879 = vmatprep.subr.mxu0 0.0
        %880 = vmatpush2.msra.mxu0 0.0
        %881 = vmatprep.subr.mxu0 0.0
        %882 = vmatpush2.msra.mxu0 0.0
        %883 = vmatprep.subr.mxu0 0.0
        %884 = vmatpush2.msra.mxu0 0.0
        %885 = vmatprep.subr.mxu0 0.0
        %886 = vmatpush2.msra.mxu0 0.0
        %887 = vmatprep.subr.mxu0 0.0
        %888 = vmatpush2.msra.mxu0 0.0
        %889 = vmatprep.subr.mxu0 0.0
        %890 = vmatpush2.msra.mxu0 0.0
        %891 = vmatprep.subr.mxu0 0.0
        %892 = vmatpush2.msra.mxu0 0.0
        %893 = vmatprep.subr.mxu0 0.0
        %894 = vmatpush2.msra.mxu0 0.0
        %895 = vmatprep.subr.mxu0 0.0
        %896 = vmatpush2.msra.mxu0 0.0
        %897 = vmatprep.subr.mxu0 0.0
        %898 = vmatpush2.msra.mxu0 0.0
        %899 = vmatprep.subr.mxu0 0.0
        %900 = vmatpush2.msra.mxu0 0.0
        %901 = vmatprep.subr.mxu0 0.0
        %902 = vmatpush2.msra.mxu0 0.0
        %903 = vmatprep.subr.mxu0 0.0
        %904 = vmatpush2.msra.mxu0 0.0
        %905 = vmatprep.subr.mxu0 0.0
        %906 = vmatpush2.msra.mxu0 0.0
        %907 = vmatprep.subr.mxu0 0.0
        %908 = vmatpush2.msra.mxu0 0.0
        %909 = vmatprep.mubr.f32.mxu0 0.0
        %910 = vmatmul.mubr.f32.gmra.mxu0 %v772
        %v911 = vpop.f32.mrf.mxu0
        %v912 = vadd.f32 0.0, %v911
        %v913 = vpop.f32.mrf.mxu0
        %v914 = vadd.f32 0.0, %v913
        %915 = vdwg.mxu0
        %920 = vrot.lane.b32.xlu0 %v841, 104
        %v921 = vpop.permute.xlu0 %920
        %922 = vrot.lane.b32.xlu0 %v843, 104
        %v923 = vpop.permute.xlu0 %922
        %924 = vrot.lane.b32.xlu0 %v912, 104
        %v925 = vpop.permute.xlu0 %924
        %926 = vrot.lane.b32.xlu0 %v914, 104
        %v927 = vpop.permute.xlu0 %926
        %vm928 = vcmask 850944
        %v929 = vsel %vm928, %v921, %v923
        %v930 = vsel %vm928, %v923, %v925
        %v931 = vsel %vm928, %v925, %v927
        %v935 = vadd.f32 %v766, %v929
        %v936 = vadd.f32 %v767, %v930
        %v937 = vadd.f32 %v768, %v931
        %s938 = scalar_lea.vmem [#allocation5], 16
        %v939 = vld [vmem:[%s938] sm:$0xf]
        %v941 = vsel %vm286, %v939, 0
        %943 = vmatprep.subr.mxu0 0.0
        %944 = vmatpush1.msra.mxu0 0.0
        %945 = vmatprep.subr.mxu0 0.0
        %946 = vmatpush1.msra.mxu0 0.0
        %947 = vmatprep.subr.mxu0 0.0
        %948 = vmatpush1.msra.mxu0 0.0
        %949 = vmatprep.subr.mxu0 0.0
        %950 = vmatpush1.msra.mxu0 0.0
        %951 = vmatprep.subr.mxu0 0.0
        %952 = vmatpush1.msra.mxu0 0.0
        %953 = vmatprep.subr.mxu0 0.0
        %954 = vmatpush1.msra.mxu0 0.0
        %955 = vmatprep.subr.mxu0 0.0
        %956 = vmatpush1.msra.mxu0 0.0
        %957 = vmatprep.subr.mxu0 0.0
        %958 = vmatpush1.msra.mxu0 0.0
        %959 = vmatprep.subr.mxu0 0.0
        %960 = vmatpush1.msra.mxu0 0.0
        %961 = vmatprep.subr.mxu0 0.0
        %962 = vmatpush1.msra.mxu0 0.0
        %963 = vmatprep.subr.mxu0 0.0
        %964 = vmatpush1.msra.mxu0 0.0
        %965 = vmatprep.subr.mxu0 0.0
        %966 = vmatpush1.msra.mxu0 0.0
        %967 = vmatprep.subr.mxu0 0.0
        %968 = vmatpush1.msra.mxu0 0.0
        %969 = vmatprep.subr.mxu0 0.0
        %970 = vmatpush1.msra.mxu0 0.0
        %971 = vmatprep.subr.mxu0 %v282
        %972 = vmatpush1.msra.mxu0 %v281
        %973 = vmatprep.subr.mxu0 %v278
        %974 = vmatpush1.msra.mxu0 %v277
        %975 = vmatprep.subr.mxu0 0.0
        %976 = vmatpush2.msra.mxu0 0.0
        %977 = vmatprep.subr.mxu0 0.0
        %978 = vmatpush2.msra.mxu0 0.0
        %979 = vmatprep.subr.mxu0 0.0
        %980 = vmatpush2.msra.mxu0 0.0
        %981 = vmatprep.subr.mxu0 0.0
        %982 = vmatpush2.msra.mxu0 0.0
        %983 = vmatprep.subr.mxu0 0.0
        %984 = vmatpush2.msra.mxu0 0.0
        %985 = vmatprep.subr.mxu0 0.0
        %986 = vmatpush2.msra.mxu0 0.0
        %987 = vmatprep.subr.mxu0 0.0
        %988 = vmatpush2.msra.mxu0 0.0
        %989 = vmatprep.subr.mxu0 0.0
        %990 = vmatpush2.msra.mxu0 0.0
        %991 = vmatprep.subr.mxu0 0.0
        %992 = vmatpush2.msra.mxu0 0.0
        %993 = vmatprep.subr.mxu0 0.0
        %994 = vmatpush2.msra.mxu0 0.0
        %995 = vmatprep.subr.mxu0 0.0
        %996 = vmatpush2.msra.mxu0 0.0
        %997 = vmatprep.subr.mxu0 0.0
        %998 = vmatpush2.msra.mxu0 0.0
        %999 = vmatprep.subr.mxu0 0.0
        %1000 = vmatpush2.msra.mxu0 0.0
        %1001 = vmatprep.subr.mxu0 0.0
        %1002 = vmatpush2.msra.mxu0 0.0
        %1003 = vmatprep.subr.mxu0 0.0
        %1004 = vmatpush2.msra.mxu0 0.0
        %1005 = vmatprep.subr.mxu0 0.0
        %1006 = vmatpush2.msra.mxu0 0.0
        %1007 = vmatprep.mubr.f32.mxu0 0.0
        %1008 = vmatmul.mubr.f32.gmra.mxu0 %v941
        %v1009 = vpop.f32.mrf.mxu0
        %v1010 = vadd.f32 0.0, %v1009
        %v1011 = vpop.f32.mrf.mxu0
        %v1012 = vadd.f32 0.0, %v1011
        %1013 = vdwg.mxu0
        %1014 = vmatprep.subr.mxu0 0.0
        %1015 = vmatpush1.msra.mxu0 0.0
        %1016 = vmatprep.subr.mxu0 0.0
        %1017 = vmatpush1.msra.mxu0 0.0
        %1018 = vmatprep.subr.mxu0 0.0
        %1019 = vmatpush1.msra.mxu0 0.0
        %1020 = vmatprep.subr.mxu0 0.0
        %1021 = vmatpush1.msra.mxu0 0.0
        %1022 = vmatprep.subr.mxu0 0.0
        %1023 = vmatpush1.msra.mxu0 0.0
        %1024 = vmatprep.subr.mxu0 0.0
        %1025 = vmatpush1.msra.mxu0 0.0
        %1026 = vmatprep.subr.mxu0 0.0
        %1027 = vmatpush1.msra.mxu0 0.0
        %1028 = vmatprep.subr.mxu0 0.0
        %1029 = vmatpush1.msra.mxu0 0.0
        %1030 = vmatprep.subr.mxu0 0.0
        %1031 = vmatpush1.msra.mxu0 0.0
        %1032 = vmatprep.subr.mxu0 0.0
        %1033 = vmatpush1.msra.mxu0 0.0
        %1034 = vmatprep.subr.mxu0 0.0
        %1035 = vmatpush1.msra.mxu0 0.0
        %1036 = vmatprep.subr.mxu0 0.0
        %1037 = vmatpush1.msra.mxu0 0.0
        %1038 = vmatprep.subr.mxu0 0.0
        %1039 = vmatpush1.msra.mxu0 0.0
        %1040 = vmatprep.subr.mxu0 0.0
        %1041 = vmatpush1.msra.mxu0 0.0
        %1042 = vmatprep.subr.mxu0 %v284
        %1043 = vmatpush1.msra.mxu0 %v283
        %1044 = vmatprep.subr.mxu0 %v280
        %1045 = vmatpush1.msra.mxu0 %v279
        %1046 = vmatprep.subr.mxu0 0.0
        %1047 = vmatpush2.msra.mxu0 0.0
        %1048 = vmatprep.subr.mxu0 0.0
        %1049 = vmatpush2.msra.mxu0 0.0
        %1050 = vmatprep.subr.mxu0 0.0
        %1051 = vmatpush2.msra.mxu0 0.0
        %1052 = vmatprep.subr.mxu0 0.0
        %1053 = vmatpush2.msra.mxu0 0.0
        %1054 = vmatprep.subr.mxu0 0.0
        %1055 = vmatpush2.msra.mxu0 0.0
        %1056 = vmatprep.subr.mxu0 0.0
        %1057 = vmatpush2.msra.mxu0 0.0
        %1058 = vmatprep.subr.mxu0 0.0
        %1059 = vmatpush2.msra.mxu0 0.0
        %1060 = vmatprep.subr.mxu0 0.0
        %1061 = vmatpush2.msra.mxu0 0.0
        %1062 = vmatprep.subr.mxu0 0.0
        %1063 = vmatpush2.msra.mxu0 0.0
        %1064 = vmatprep.subr.mxu0 0.0
        %1065 = vmatpush2.msra.mxu0 0.0
        %1066 = vmatprep.subr.mxu0 0.0
        %1067 = vmatpush2.msra.mxu0 0.0
        %1068 = vmatprep.subr.mxu0 0.0
        %1069 = vmatpush2.msra.mxu0 0.0
        %1070 = vmatprep.subr.mxu0 0.0
        %1071 = vmatpush2.msra.mxu0 0.0
        %1072 = vmatprep.subr.mxu0 0.0
        %1073 = vmatpush2.msra.mxu0 0.0
        %1074 = vmatprep.subr.mxu0 0.0
        %1075 = vmatpush2.msra.mxu0 0.0
        %1076 = vmatprep.subr.mxu0 0.0
        %1077 = vmatpush2.msra.mxu0 0.0
        %1078 = vmatprep.mubr.f32.mxu0 0.0
        %1079 = vmatmul.mubr.f32.gmra.mxu0 %v941
        %v1080 = vpop.f32.mrf.mxu0
        %v1081 = vadd.f32 0.0, %v1080
        %v1082 = vpop.f32.mrf.mxu0
        %v1083 = vadd.f32 0.0, %v1082
        %1084 = vdwg.mxu0
        %1089 = vrot.lane.b32.xlu0 %v1010, 103
        %v1090 = vpop.permute.xlu0 %1089
        %1091 = vrot.lane.b32.xlu0 %v1012, 103
        %v1092 = vpop.permute.xlu0 %1091
        %1093 = vrot.lane.b32.xlu0 %v1081, 103
        %v1094 = vpop.permute.xlu0 %1093
        %1095 = vrot.lane.b32.xlu0 %v1083, 103
        %v1096 = vpop.permute.xlu0 %1095
        %vm1097 = vcmask 842752
        %v1098 = vsel %vm1097, %v1090, %v1092
        %v1099 = vsel %vm1097, %v1092, %v1094
        %v1100 = vsel %vm1097, %v1094, %v1096
        %v1104 = vadd.f32 %v935, %v1098
        %v1105 = vadd.f32 %v936, %v1099
        %v1106 = vadd.f32 %v937, %v1100
        %s1107 = scalar_lea.vmem [#allocation5], 20
        %v1108 = vld [vmem:[%s1107] sm:$0xf]
        %v1110 = vsel %vm286, %v1108, 0
        %1112 = vmatprep.subr.mxu0 0.0
        %1113 = vmatpush1.msra.mxu0 0.0
        %1114 = vmatprep.subr.mxu0 0.0
        %1115 = vmatpush1.msra.mxu0 0.0
        %1116 = vmatprep.subr.mxu0 0.0
        %1117 = vmatpush1.msra.mxu0 0.0
        %1118 = vmatprep.subr.mxu0 0.0
        %1119 = vmatpush1.msra.mxu0 0.0
        %1120 = vmatprep.subr.mxu0 0.0
        %1121 = vmatpush1.msra.mxu0 0.0
        %1122 = vmatprep.subr.mxu0 0.0
        %1123 = vmatpush1.msra.mxu0 0.0
        %1124 = vmatprep.subr.mxu0 0.0
        %1125 = vmatpush1.msra.mxu0 0.0
        %1126 = vmatprep.subr.mxu0 0.0
        %1127 = vmatpush1.msra.mxu0 0.0
        %1128 = vmatprep.subr.mxu0 0.0
        %1129 = vmatpush1.msra.mxu0 0.0
        %1130 = vmatprep.subr.mxu0 0.0
        %1131 = vmatpush1.msra.mxu0 0.0
        %1132 = vmatprep.subr.mxu0 0.0
        %1133 = vmatpush1.msra.mxu0 0.0
        %1134 = vmatprep.subr.mxu0 0.0
        %1135 = vmatpush1.msra.mxu0 0.0
        %1136 = vmatprep.subr.mxu0 0.0
        %1137 = vmatpush1.msra.mxu0 0.0
        %1138 = vmatprep.subr.mxu0 0.0
        %1139 = vmatpush1.msra.mxu0 0.0
        %1140 = vmatprep.subr.mxu0 %v282
        %1141 = vmatpush1.msra.mxu0 %v281
        %1142 = vmatprep.subr.mxu0 %v278
        %1143 = vmatpush1.msra.mxu0 %v277
        %1144 = vmatprep.subr.mxu0 0.0
        %1145 = vmatpush2.msra.mxu0 0.0
        %1146 = vmatprep.subr.mxu0 0.0
        %1147 = vmatpush2.msra.mxu0 0.0
        %1148 = vmatprep.subr.mxu0 0.0
        %1149 = vmatpush2.msra.mxu0 0.0
        %1150 = vmatprep.subr.mxu0 0.0
        %1151 = vmatpush2.msra.mxu0 0.0
        %1152 = vmatprep.subr.mxu0 0.0
        %1153 = vmatpush2.msra.mxu0 0.0
        %1154 = vmatprep.subr.mxu0 0.0
        %1155 = vmatpush2.msra.mxu0 0.0
        %1156 = vmatprep.subr.mxu0 0.0
        %1157 = vmatpush2.msra.mxu0 0.0
        %1158 = vmatprep.subr.mxu0 0.0
        %1159 = vmatpush2.msra.mxu0 0.0
        %1160 = vmatprep.subr.mxu0 0.0
        %1161 = vmatpush2.msra.mxu0 0.0
        %1162 = vmatprep.subr.mxu0 0.0
        %1163 = vmatpush2.msra.mxu0 0.0
        %1164 = vmatprep.subr.mxu0 0.0
        %1165 = vmatpush2.msra.mxu0 0.0
        %1166 = vmatprep.subr.mxu0 0.0
        %1167 = vmatpush2.msra.mxu0 0.0
        %1168 = vmatprep.subr.mxu0 0.0
        %1169 = vmatpush2.msra.mxu0 0.0
        %1170 = vmatprep.subr.mxu0 0.0
        %1171 = vmatpush2.msra.mxu0 0.0
        %1172 = vmatprep.subr.mxu0 0.0
        %1173 = vmatpush2.msra.mxu0 0.0
        %1174 = vmatprep.subr.mxu0 0.0
        %1175 = vmatpush2.msra.mxu0 0.0
        %1176 = vmatprep.mubr.f32.mxu0 0.0
        %1177 = vmatmul.mubr.f32.gmra.mxu0 %v1110
        %v1178 = vpop.f32.mrf.mxu0
        %v1179 = vadd.f32 0.0, %v1178
        %v1180 = vpop.f32.mrf.mxu0
        %v1181 = vadd.f32 0.0, %v1180
        %1182 = vdwg.mxu0
        %1183 = vmatprep.subr.mxu0 0.0
        %1184 = vmatpush1.msra.mxu0 0.0
        %1185 = vmatprep.subr.mxu0 0.0
        %1186 = vmatpush1.msra.mxu0 0.0
        %1187 = vmatprep.subr.mxu0 0.0
        %1188 = vmatpush1.msra.mxu0 0.0
        %1189 = vmatprep.subr.mxu0 0.0
        %1190 = vmatpush1.msra.mxu0 0.0
        %1191 = vmatprep.subr.mxu0 0.0
        %1192 = vmatpush1.msra.mxu0 0.0
        %1193 = vmatprep.subr.mxu0 0.0
        %1194 = vmatpush1.msra.mxu0 0.0
        %1195 = vmatprep.subr.mxu0 0.0
        %1196 = vmatpush1.msra.mxu0 0.0
        %1197 = vmatprep.subr.mxu0 0.0
        %1198 = vmatpush1.msra.mxu0 0.0
        %1199 = vmatprep.subr.mxu0 0.0
        %1200 = vmatpush1.msra.mxu0 0.0
        %1201 = vmatprep.subr.mxu0 0.0
        %1202 = vmatpush1.msra.mxu0 0.0
        %1203 = vmatprep.subr.mxu0 0.0
        %1204 = vmatpush1.msra.mxu0 0.0
        %1205 = vmatprep.subr.mxu0 0.0
        %1206 = vmatpush1.msra.mxu0 0.0
        %1207 = vmatprep.subr.mxu0 0.0
        %1208 = vmatpush1.msra.mxu0 0.0
        %1209 = vmatprep.subr.mxu0 0.0
        %1210 = vmatpush1.msra.mxu0 0.0
        %1211 = vmatprep.subr.mxu0 %v284
        %1212 = vmatpush1.msra.mxu0 %v283
        %1213 = vmatprep.subr.mxu0 %v280
        %1214 = vmatpush1.msra.mxu0 %v279
        %1215 = vmatprep.subr.mxu0 0.0
        %1216 = vmatpush2.msra.mxu0 0.0
        %1217 = vmatprep.subr.mxu0 0.0
        %1218 = vmatpush2.msra.mxu0 0.0
        %1219 = vmatprep.subr.mxu0 0.0
        %1220 = vmatpush2.msra.mxu0 0.0
        %1221 = vmatprep.subr.mxu0 0.0
        %1222 = vmatpush2.msra.mxu0 0.0
        %1223 = vmatprep.subr.mxu0 0.0
        %1224 = vmatpush2.msra.mxu0 0.0
        %1225 = vmatprep.subr.mxu0 0.0
        %1226 = vmatpush2.msra.mxu0 0.0
        %1227 = vmatprep.subr.mxu0 0.0
        %1228 = vmatpush2.msra.mxu0 0.0
        %1229 = vmatprep.subr.mxu0 0.0
        %1230 = vmatpush2.msra.mxu0 0.0
        %1231 = vmatprep.subr.mxu0 0.0
        %1232 = vmatpush2.msra.mxu0 0.0
        %1233 = vmatprep.subr.mxu0 0.0
        %1234 = vmatpush2.msra.mxu0 0.0
        %1235 = vmatprep.subr.mxu0 0.0
        %1236 = vmatpush2.msra.mxu0 0.0
        %1237 = vmatprep.subr.mxu0 0.0
        %1238 = vmatpush2.msra.mxu0 0.0
        %1239 = vmatprep.subr.mxu0 0.0
        %1240 = vmatpush2.msra.mxu0 0.0
        %1241 = vmatprep.subr.mxu0 0.0
        %1242 = vmatpush2.msra.mxu0 0.0
        %1243 = vmatprep.subr.mxu0 0.0
        %1244 = vmatpush2.msra.mxu0 0.0
        %1245 = vmatprep.subr.mxu0 0.0
        %1246 = vmatpush2.msra.mxu0 0.0
        %1247 = vmatprep.mubr.f32.mxu0 0.0
        %1248 = vmatmul.mubr.f32.gmra.mxu0 %v1110
        %v1249 = vpop.f32.mrf.mxu0
        %v1250 = vadd.f32 0.0, %v1249
        %v1251 = vpop.f32.mrf.mxu0
        %v1252 = vadd.f32 0.0, %v1251
        %1253 = vdwg.mxu0
        %1258 = vrot.lane.b32.xlu0 %v1179, 102
        %v1259 = vpop.permute.xlu0 %1258
        %1260 = vrot.lane.b32.xlu0 %v1181, 102
        %v1261 = vpop.permute.xlu0 %1260
        %1262 = vrot.lane.b32.xlu0 %v1250, 102
        %v1263 = vpop.permute.xlu0 %1262
        %1264 = vrot.lane.b32.xlu0 %v1252, 102
        %v1265 = vpop.permute.xlu0 %1264
        %vm1266 = vcmask 834560
        %v1267 = vsel %vm1266, %v1259, %v1261
        %v1268 = vsel %vm1266, %v1261, %v1263
        %v1269 = vsel %vm1266, %v1263, %v1265
        %v1273 = vadd.f32 %v1104, %v1267
        %v1274 = vadd.f32 %v1105, %v1268
        %v1275 = vadd.f32 %v1106, %v1269
        %s1276 = scalar_lea.vmem [#allocation5], 24
        %v1277 = vld [vmem:[%s1276] sm:$0xf]
        %v1279 = vsel %vm286, %v1277, 0
        %1281 = vmatprep.subr.mxu0 0.0
        %1282 = vmatpush1.msra.mxu0 0.0
        %1283 = vmatprep.subr.mxu0 0.0
        %1284 = vmatpush1.msra.mxu0 0.0
        %1285 = vmatprep.subr.mxu0 0.0
        %1286 = vmatpush1.msra.mxu0 0.0
        %1287 = vmatprep.subr.mxu0 0.0
        %1288 = vmatpush1.msra.mxu0 0.0
        %1289 = vmatprep.subr.mxu0 0.0
        %1290 = vmatpush1.msra.mxu0 0.0
        %1291 = vmatprep.subr.mxu0 0.0
        %1292 = vmatpush1.msra.mxu0 0.0
        %1293 = vmatprep.subr.mxu0 0.0
        %1294 = vmatpush1.msra.mxu0 0.0
        %1295 = vmatprep.subr.mxu0 0.0
        %1296 = vmatpush1.msra.mxu0 0.0
        %1297 = vmatprep.subr.mxu0 0.0
        %1298 = vmatpush1.msra.mxu0 0.0
        %1299 = vmatprep.subr.mxu0 0.0
        %1300 = vmatpush1.msra.mxu0 0.0
        %1301 = vmatprep.subr.mxu0 0.0
        %1302 = vmatpush1.msra.mxu0 0.0
        %1303 = vmatprep.subr.mxu0 0.0
        %1304 = vmatpush1.msra.mxu0 0.0
        %1305 = vmatprep.subr.mxu0 0.0
        %1306 = vmatpush1.msra.mxu0 0.0
        %1307 = vmatprep.subr.mxu0 0.0
        %1308 = vmatpush1.msra.mxu0 0.0
        %1309 = vmatprep.subr.mxu0 %v282
        %1310 = vmatpush1.msra.mxu0 %v281
        %1311 = vmatprep.subr.mxu0 %v278
        %1312 = vmatpush1.msra.mxu0 %v277
        %1313 = vmatprep.subr.mxu0 0.0
        %1314 = vmatpush2.msra.mxu0 0.0
        %1315 = vmatprep.subr.mxu0 0.0
        %1316 = vmatpush2.msra.mxu0 0.0
        %1317 = vmatprep.subr.mxu0 0.0
        %1318 = vmatpush2.msra.mxu0 0.0
        %1319 = vmatprep.subr.mxu0 0.0
        %1320 = vmatpush2.msra.mxu0 0.0
        %1321 = vmatprep.subr.mxu0 0.0
        %1322 = vmatpush2.msra.mxu0 0.0
        %1323 = vmatprep.subr.mxu0 0.0
        %1324 = vmatpush2.msra.mxu0 0.0
        %1325 = vmatprep.subr.mxu0 0.0
        %1326 = vmatpush2.msra.mxu0 0.0
        %1327 = vmatprep.subr.mxu0 0.0
        %1328 = vmatpush2.msra.mxu0 0.0
        %1329 = vmatprep.subr.mxu0 0.0
        %1330 = vmatpush2.msra.mxu0 0.0
        %1331 = vmatprep.subr.mxu0 0.0
        %1332 = vmatpush2.msra.mxu0 0.0
        %1333 = vmatprep.subr.mxu0 0.0
        %1334 = vmatpush2.msra.mxu0 0.0
        %1335 = vmatprep.subr.mxu0 0.0
        %1336 = vmatpush2.msra.mxu0 0.0
        %1337 = vmatprep.subr.mxu0 0.0
        %1338 = vmatpush2.msra.mxu0 0.0
        %1339 = vmatprep.subr.mxu0 0.0
        %1340 = vmatpush2.msra.mxu0 0.0
        %1341 = vmatprep.subr.mxu0 0.0
        %1342 = vmatpush2.msra.mxu0 0.0
        %1343 = vmatprep.subr.mxu0 0.0
        %1344 = vmatpush2.msra.mxu0 0.0
        %1345 = vmatprep.mubr.f32.mxu0 0.0
        %1346 = vmatmul.mubr.f32.gmra.mxu0 %v1279
        %v1347 = vpop.f32.mrf.mxu0
        %v1348 = vadd.f32 0.0, %v1347
        %v1349 = vpop.f32.mrf.mxu0
        %v1350 = vadd.f32 0.0, %v1349
        %1351 = vdwg.mxu0
        %1352 = vmatprep.subr.mxu0 0.0
        %1353 = vmatpush1.msra.mxu0 0.0
        %1354 = vmatprep.subr.mxu0 0.0
        %1355 = vmatpush1.msra.mxu0 0.0
        %1356 = vmatprep.subr.mxu0 0.0
        %1357 = vmatpush1.msra.mxu0 0.0
        %1358 = vmatprep.subr.mxu0 0.0
        %1359 = vmatpush1.msra.mxu0 0.0
        %1360 = vmatprep.subr.mxu0 0.0
        %1361 = vmatpush1.msra.mxu0 0.0
        %1362 = vmatprep.subr.mxu0 0.0
        %1363 = vmatpush1.msra.mxu0 0.0
        %1364 = vmatprep.subr.mxu0 0.0
        %1365 = vmatpush1.msra.mxu0 0.0
        %1366 = vmatprep.subr.mxu0 0.0
        %1367 = vmatpush1.msra.mxu0 0.0
        %1368 = vmatprep.subr.mxu0 0.0
        %1369 = vmatpush1.msra.mxu0 0.0
        %1370 = vmatprep.subr.mxu0 0.0
        %1371 = vmatpush1.msra.mxu0 0.0
        %1372 = vmatprep.subr.mxu0 0.0
        %1373 = vmatpush1.msra.mxu0 0.0
        %1374 = vmatprep.subr.mxu0 0.0
        %1375 = vmatpush1.msra.mxu0 0.0
        %1376 = vmatprep.subr.mxu0 0.0
        %1377 = vmatpush1.msra.mxu0 0.0
        %1378 = vmatprep.subr.mxu0 0.0
        %1379 = vmatpush1.msra.mxu0 0.0
        %1380 = vmatprep.subr.mxu0 %v284
        %1381 = vmatpush1.msra.mxu0 %v283
        %1382 = vmatprep.subr.mxu0 %v280
        %1383 = vmatpush1.msra.mxu0 %v279
        %1384 = vmatprep.subr.mxu0 0.0
        %1385 = vmatpush2.msra.mxu0 0.0
        %1386 = vmatprep.subr.mxu0 0.0
        %1387 = vmatpush2.msra.mxu0 0.0
        %1388 = vmatprep.subr.mxu0 0.0
        %1389 = vmatpush2.msra.mxu0 0.0
        %1390 = vmatprep.subr.mxu0 0.0
        %1391 = vmatpush2.msra.mxu0 0.0
        %1392 = vmatprep.subr.mxu0 0.0
        %1393 = vmatpush2.msra.mxu0 0.0
        %1394 = vmatprep.subr.mxu0 0.0
        %1395 = vmatpush2.msra.mxu0 0.0
        %1396 = vmatprep.subr.mxu0 0.0
        %1397 = vmatpush2.msra.mxu0 0.0
        %1398 = vmatprep.subr.mxu0 0.0
        %1399 = vmatpush2.msra.mxu0 0.0
        %1400 = vmatprep.subr.mxu0 0.0
        %1401 = vmatpush2.msra.mxu0 0.0
        %1402 = vmatprep.subr.mxu0 0.0
        %1403 = vmatpush2.msra.mxu0 0.0
        %1404 = vmatprep.subr.mxu0 0.0
        %1405 = vmatpush2.msra.mxu0 0.0
        %1406 = vmatprep.subr.mxu0 0.0
        %1407 = vmatpush2.msra.mxu0 0.0
        %1408 = vmatprep.subr.mxu0 0.0
        %1409 = vmatpush2.msra.mxu0 0.0
        %1410 = vmatprep.subr.mxu0 0.0
        %1411 = vmatpush2.msra.mxu0 0.0
        %1412 = vmatprep.subr.mxu0 0.0
        %1413 = vmatpush2.msra.mxu0 0.0
        %1414 = vmatprep.subr.mxu0 0.0
        %1415 = vmatpush2.msra.mxu0 0.0
        %1416 = vmatprep.mubr.f32.mxu0 0.0
        %1417 = vmatmul.mubr.f32.gmra.mxu0 %v1279
        %v1418 = vpop.f32.mrf.mxu0
        %v1419 = vadd.f32 0.0, %v1418
        %v1420 = vpop.f32.mrf.mxu0
        %v1421 = vadd.f32 0.0, %v1420
        %1422 = vdwg.mxu0
        %1427 = vrot.lane.b32.xlu0 %v1348, 80
        %v1428 = vpop.permute.xlu0 %1427
        %1429 = vrot.lane.b32.xlu0 %v1350, 80
        %v1430 = vpop.permute.xlu0 %1429
        %1431 = vrot.lane.b32.xlu0 %v1419, 80
        %v1432 = vpop.permute.xlu0 %1431
        %1433 = vrot.lane.b32.xlu0 %v1421, 80
        %v1434 = vpop.permute.xlu0 %1433
        %vm1435 = vcmask 654336
        %v1436 = vsel %vm1435, %v1428, %v1430
        %v1437 = vsel %vm1435, %v1430, %v1432
        %v1438 = vsel %vm1435, %v1432, %v1434
        %v1442 = vadd.f32 %v1273, %v1436
        %v1443 = vadd.f32 %v1274, %v1437
        %v1444 = vadd.f32 %v1275, %v1438
        %s1445 = scalar_lea.vmem [#allocation5], 28
        %v1446 = vld [vmem:[%s1445] sm:$0xf]
        %v1448 = vsel %vm286, %v1446, 0
        %1450 = vmatprep.subr.mxu0 0.0
        %1451 = vmatpush1.msra.mxu0 0.0
        %1452 = vmatprep.subr.mxu0 0.0
        %1453 = vmatpush1.msra.mxu0 0.0
        %1454 = vmatprep.subr.mxu0 0.0
        %1455 = vmatpush1.msra.mxu0 0.0
        %1456 = vmatprep.subr.mxu0 0.0
        %1457 = vmatpush1.msra.mxu0 0.0
        %1458 = vmatprep.subr.mxu0 0.0
        %1459 = vmatpush1.msra.mxu0 0.0
        %1460 = vmatprep.subr.mxu0 0.0
        %1461 = vmatpush1.msra.mxu0 0.0
        %1462 = vmatprep.subr.mxu0 0.0
        %1463 = vmatpush1.msra.mxu0 0.0
        %1464 = vmatprep.subr.mxu0 0.0
        %1465 = vmatpush1.msra.mxu0 0.0
        %1466 = vmatprep.subr.mxu0 0.0
        %1467 = vmatpush1.msra.mxu0 0.0
        %1468 = vmatprep.subr.mxu0 0.0
        %1469 = vmatpush1.msra.mxu0 0.0
        %1470 = vmatprep.subr.mxu0 0.0
        %1471 = vmatpush1.msra.mxu0 0.0
        %1472 = vmatprep.subr.mxu0 0.0
        %1473 = vmatpush1.msra.mxu0 0.0
        %1474 = vmatprep.subr.mxu0 0.0
        %1475 = vmatpush1.msra.mxu0 0.0
        %1476 = vmatprep.subr.mxu0 0.0
        %1477 = vmatpush1.msra.mxu0 0.0
        %1478 = vmatprep.subr.mxu0 %v282
        %1479 = vmatpush1.msra.mxu0 %v281
        %1480 = vmatprep.subr.mxu0 %v278
        %1481 = vmatpush1.msra.mxu0 %v277
        %1482 = vmatprep.subr.mxu0 0.0
        %1483 = vmatpush2.msra.mxu0 0.0
        %1484 = vmatprep.subr.mxu0 0.0
        %1485 = vmatpush2.msra.mxu0 0.0
        %1486 = vmatprep.subr.mxu0 0.0
        %1487 = vmatpush2.msra.mxu0 0.0
        %1488 = vmatprep.subr.mxu0 0.0
        %1489 = vmatpush2.msra.mxu0 0.0
        %1490 = vmatprep.subr.mxu0 0.0
        %1491 = vmatpush2.msra.mxu0 0.0
        %1492 = vmatprep.subr.mxu0 0.0
        %1493 = vmatpush2.msra.mxu0 0.0
        %1494 = vmatprep.subr.mxu0 0.0
        %1495 = vmatpush2.msra.mxu0 0.0
        %1496 = vmatprep.subr.mxu0 0.0
        %1497 = vmatpush2.msra.mxu0 0.0
        %1498 = vmatprep.subr.mxu0 0.0
        %1499 = vmatpush2.msra.mxu0 0.0
        %1500 = vmatprep.subr.mxu0 0.0
        %1501 = vmatpush2.msra.mxu0 0.0
        %1502 = vmatprep.subr.mxu0 0.0
        %1503 = vmatpush2.msra.mxu0 0.0
        %1504 = vmatprep.subr.mxu0 0.0
        %1505 = vmatpush2.msra.mxu0 0.0
        %1506 = vmatprep.subr.mxu0 0.0
        %1507 = vmatpush2.msra.mxu0 0.0
        %1508 = vmatprep.subr.mxu0 0.0
        %1509 = vmatpush2.msra.mxu0 0.0
        %1510 = vmatprep.subr.mxu0 0.0
        %1511 = vmatpush2.msra.mxu0 0.0
        %1512 = vmatprep.subr.mxu0 0.0
        %1513 = vmatpush2.msra.mxu0 0.0
        %1514 = vmatprep.mubr.f32.mxu0 0.0
        %1515 = vmatmul.mubr.f32.gmra.mxu0 %v1448
        %v1516 = vpop.f32.mrf.mxu0
        %v1517 = vadd.f32 0.0, %v1516
        %v1518 = vpop.f32.mrf.mxu0
        %v1519 = vadd.f32 0.0, %v1518
        %1520 = vdwg.mxu0
        %1521 = vmatprep.subr.mxu0 0.0
        %1522 = vmatpush1.msra.mxu0 0.0
        %1523 = vmatprep.subr.mxu0 0.0
        %1524 = vmatpush1.msra.mxu0 0.0
        %1525 = vmatprep.subr.mxu0 0.0
        %1526 = vmatpush1.msra.mxu0 0.0
        %1527 = vmatprep.subr.mxu0 0.0
        %1528 = vmatpush1.msra.mxu0 0.0
        %1529 = vmatprep.subr.mxu0 0.0
        %1530 = vmatpush1.msra.mxu0 0.0
        %1531 = vmatprep.subr.mxu0 0.0
        %1532 = vmatpush1.msra.mxu0 0.0
        %1533 = vmatprep.subr.mxu0 0.0
        %1534 = vmatpush1.msra.mxu0 0.0
        %1535 = vmatprep.subr.mxu0 0.0
        %1536 = vmatpush1.msra.mxu0 0.0
        %1537 = vmatprep.subr.mxu0 0.0
        %1538 = vmatpush1.msra.mxu0 0.0
        %1539 = vmatprep.subr.mxu0 0.0
        %1540 = vmatpush1.msra.mxu0 0.0
        %1541 = vmatprep.subr.mxu0 0.0
        %1542 = vmatpush1.msra.mxu0 0.0
        %1543 = vmatprep.subr.mxu0 0.0
        %1544 = vmatpush1.msra.mxu0 0.0
        %1545 = vmatprep.subr.mxu0 0.0
        %1546 = vmatpush1.msra.mxu0 0.0
        %1547 = vmatprep.subr.mxu0 0.0
        %1548 = vmatpush1.msra.mxu0 0.0
        %1549 = vmatprep.subr.mxu0 %v284
        %1550 = vmatpush1.msra.mxu0 %v283
        %1551 = vmatprep.subr.mxu0 %v280
        %1552 = vmatpush1.msra.mxu0 %v279
        %1553 = vmatprep.subr.mxu0 0.0
        %1554 = vmatpush2.msra.mxu0 0.0
        %1555 = vmatprep.subr.mxu0 0.0
        %1556 = vmatpush2.msra.mxu0 0.0
        %1557 = vmatprep.subr.mxu0 0.0
        %1558 = vmatpush2.msra.mxu0 0.0
        %1559 = vmatprep.subr.mxu0 0.0
        %1560 = vmatpush2.msra.mxu0 0.0
        %1561 = vmatprep.subr.mxu0 0.0
        %1562 = vmatpush2.msra.mxu0 0.0
        %1563 = vmatprep.subr.mxu0 0.0
        %1564 = vmatpush2.msra.mxu0 0.0
        %1565 = vmatprep.subr.mxu0 0.0
        %1566 = vmatpush2.msra.mxu0 0.0
        %1567 = vmatprep.subr.mxu0 0.0
        %1568 = vmatpush2.msra.mxu0 0.0
        %1569 = vmatprep.subr.mxu0 0.0
        %1570 = vmatpush2.msra.mxu0 0.0
        %1571 = vmatprep.subr.mxu0 0.0
        %1572 = vmatpush2.msra.mxu0 0.0
        %1573 = vmatprep.subr.mxu0 0.0
        %1574 = vmatpush2.msra.mxu0 0.0
        %1575 = vmatprep.subr.mxu0 0.0
        %1576 = vmatpush2.msra.mxu0 0.0
        %1577 = vmatprep.subr.mxu0 0.0
        %1578 = vmatpush2.msra.mxu0 0.0
        %1579 = vmatprep.subr.mxu0 0.0
        %1580 = vmatpush2.msra.mxu0 0.0
        %1581 = vmatprep.subr.mxu0 0.0
        %1582 = vmatpush2.msra.mxu0 0.0
        %1583 = vmatprep.subr.mxu0 0.0
        %1584 = vmatpush2.msra.mxu0 0.0
        %1585 = vmatprep.mubr.f32.mxu0 0.0
        %1586 = vmatmul.mubr.f32.gmra.mxu0 %v1448
        %v1587 = vpop.f32.mrf.mxu0
        %v1588 = vadd.f32 0.0, %v1587
        %v1589 = vpop.f32.mrf.mxu0
        %v1590 = vadd.f32 0.0, %v1589
        %1591 = vdwg.mxu0
        %1596 = vrot.lane.b32.xlu0 %v1517, 79
        %v1597 = vpop.permute.xlu0 %1596
        %1598 = vrot.lane.b32.xlu0 %v1519, 79
        %v1599 = vpop.permute.xlu0 %1598
        %1600 = vrot.lane.b32.xlu0 %v1588, 79
        %v1601 = vpop.permute.xlu0 %1600
        %1602 = vrot.lane.b32.xlu0 %v1590, 79
        %v1603 = vpop.permute.xlu0 %1602
        %vm1604 = vcmask 646144
        %v1605 = vsel %vm1604, %v1597, %v1599
        %v1606 = vsel %vm1604, %v1599, %v1601
        %v1607 = vsel %vm1604, %v1601, %v1603
        %v1611 = vadd.f32 %v1442, %v1605
        %v1612 = vadd.f32 %v1443, %v1606
        %v1613 = vadd.f32 %v1444, %v1607
        %s1614 = scalar_lea.vmem [#allocation5], 32
        %v1615 = vld [vmem:[%s1614] sm:$0xf]
        %v1617 = vsel %vm286, %v1615, 0
        %1619 = vmatprep.subr.mxu0 0.0
        %1620 = vmatpush1.msra.mxu0 0.0
        %1621 = vmatprep.subr.mxu0 0.0
        %1622 = vmatpush1.msra.mxu0 0.0
        %1623 = vmatprep.subr.mxu0 0.0
        %1624 = vmatpush1.msra.mxu0 0.0
        %1625 = vmatprep.subr.mxu0 0.0
        %1626 = vmatpush1.msra.mxu0 0.0
        %1627 = vmatprep.subr.mxu0 0.0
        %1628 = vmatpush1.msra.mxu0 0.0
        %1629 = vmatprep.subr.mxu0 0.0
        %1630 = vmatpush1.msra.mxu0 0.0
        %1631 = vmatprep.subr.mxu0 0.0
        %1632 = vmatpush1.msra.mxu0 0.0
        %1633 = vmatprep.subr.mxu0 0.0
        %1634 = vmatpush1.msra.mxu0 0.0
        %1635 = vmatprep.subr.mxu0 0.0
        %1636 = vmatpush1.msra.mxu0 0.0
        %1637 = vmatprep.subr.mxu0 0.0
        %1638 = vmatpush1.msra.mxu0 0.0
        %1639 = vmatprep.subr.mxu0 0.0
        %1640 = vmatpush1.msra.mxu0 0.0
        %1641 = vmatprep.subr.mxu0 0.0
        %1642 = vmatpush1.msra.mxu0 0.0
        %1643 = vmatprep.subr.mxu0 0.0
        %1644 = vmatpush1.msra.mxu0 0.0
        %1645 = vmatprep.subr.mxu0 0.0
        %1646 = vmatpush1.msra.mxu0 0.0
        %1647 = vmatprep.subr.mxu0 %v282
        %1648 = vmatpush1.msra.mxu0 %v281
        %1649 = vmatprep.subr.mxu0 %v278
        %1650 = vmatpush1.msra.mxu0 %v277
        %1651 = vmatprep.subr.mxu0 0.0
        %1652 = vmatpush2.msra.mxu0 0.0
        %1653 = vmatprep.subr.mxu0 0.0
        %1654 = vmatpush2.msra.mxu0 0.0
        %1655 = vmatprep.subr.mxu0 0.0
        %1656 = vmatpush2.msra.mxu0 0.0
        %1657 = vmatprep.subr.mxu0 0.0
        %1658 = vmatpush2.msra.mxu0 0.0
        %1659 = vmatprep.subr.mxu0 0.0
        %1660 = vmatpush2.msra.mxu0 0.0
        %1661 = vmatprep.subr.mxu0 0.0
        %1662 = vmatpush2.msra.mxu0 0.0
        %1663 = vmatprep.subr.mxu0 0.0
        %1664 = vmatpush2.msra.mxu0 0.0
        %1665 = vmatprep.subr.mxu0 0.0
        %1666 = vmatpush2.msra.mxu0 0.0
        %1667 = vmatprep.subr.mxu0 0.0
        %1668 = vmatpush2.msra.mxu0 0.0
        %1669 = vmatprep.subr.mxu0 0.0
        %1670 = vmatpush2.msra.mxu0 0.0
        %1671 = vmatprep.subr.mxu0 0.0
        %1672 = vmatpush2.msra.mxu0 0.0
        %1673 = vmatprep.subr.mxu0 0.0
        %1674 = vmatpush2.msra.mxu0 0.0
        %1675 = vmatprep.subr.mxu0 0.0
        %1676 = vmatpush2.msra.mxu0 0.0
        %1677 = vmatprep.subr.mxu0 0.0
        %1678 = vmatpush2.msra.mxu0 0.0
        %1679 = vmatprep.subr.mxu0 0.0
        %1680 = vmatpush2.msra.mxu0 0.0
        %1681 = vmatprep.subr.mxu0 0.0
        %1682 = vmatpush2.msra.mxu0 0.0
        %1683 = vmatprep.mubr.f32.mxu0 0.0
        %1684 = vmatmul.mubr.f32.gmra.mxu0 %v1617
        %v1685 = vpop.f32.mrf.mxu0
        %v1686 = vadd.f32 0.0, %v1685
        %v1687 = vpop.f32.mrf.mxu0
        %v1688 = vadd.f32 0.0, %v1687
        %1689 = vdwg.mxu0
        %1690 = vmatprep.subr.mxu0 0.0
        %1691 = vmatpush1.msra.mxu0 0.0
        %1692 = vmatprep.subr.mxu0 0.0
        %1693 = vmatpush1.msra.mxu0 0.0
        %1694 = vmatprep.subr.mxu0 0.0
        %1695 = vmatpush1.msra.mxu0 0.0
        %1696 = vmatprep.subr.mxu0 0.0
        %1697 = vmatpush1.msra.mxu0 0.0
        %1698 = vmatprep.subr.mxu0 0.0
        %1699 = vmatpush1.msra.mxu0 0.0
        %1700 = vmatprep.subr.mxu0 0.0
        %1701 = vmatpush1.msra.mxu0 0.0
        %1702 = vmatprep.subr.mxu0 0.0
        %1703 = vmatpush1.msra.mxu0 0.0
        %1704 = vmatprep.subr.mxu0 0.0
        %1705 = vmatpush1.msra.mxu0 0.0
        %1706 = vmatprep.subr.mxu0 0.0
        %1707 = vmatpush1.msra.mxu0 0.0
        %1708 = vmatprep.subr.mxu0 0.0
        %1709 = vmatpush1.msra.mxu0 0.0
        %1710 = vmatprep.subr.mxu0 0.0
        %1711 = vmatpush1.msra.mxu0 0.0
        %1712 = vmatprep.subr.mxu0 0.0
        %1713 = vmatpush1.msra.mxu0 0.0
        %1714 = vmatprep.subr.mxu0 0.0
        %1715 = vmatpush1.msra.mxu0 0.0
        %1716 = vmatprep.subr.mxu0 0.0
        %1717 = vmatpush1.msra.mxu0 0.0
        %1718 = vmatprep.subr.mxu0 %v284
        %1719 = vmatpush1.msra.mxu0 %v283
        %1720 = vmatprep.subr.mxu0 %v280
        %1721 = vmatpush1.msra.mxu0 %v279
        %1722 = vmatprep.subr.mxu0 0.0
        %1723 = vmatpush2.msra.mxu0 0.0
        %1724 = vmatprep.subr.mxu0 0.0
        %1725 = vmatpush2.msra.mxu0 0.0
        %1726 = vmatprep.subr.mxu0 0.0
        %1727 = vmatpush2.msra.mxu0 0.0
        %1728 = vmatprep.subr.mxu0 0.0
        %1729 = vmatpush2.msra.mxu0 0.0
        %1730 = vmatprep.subr.mxu0 0.0
        %1731 = vmatpush2.msra.mxu0 0.0
        %1732 = vmatprep.subr.mxu0 0.0
        %1733 = vmatpush2.msra.mxu0 0.0
        %1734 = vmatprep.subr.mxu0 0.0
        %1735 = vmatpush2.msra.mxu0 0.0
        %1736 = vmatprep.subr.mxu0 0.0
        %1737 = vmatpush2.msra.mxu0 0.0
        %1738 = vmatprep.subr.mxu0 0.0
        %1739 = vmatpush2.msra.mxu0 0.0
        %1740 = vmatprep.subr.mxu0 0.0
        %1741 = vmatpush2.msra.mxu0 0.0
        %1742 = vmatprep.subr.mxu0 0.0
        %1743 = vmatpush2.msra.mxu0 0.0
        %1744 = vmatprep.subr.mxu0 0.0
        %1745 = vmatpush2.msra.mxu0 0.0
        %1746 = vmatprep.subr.mxu0 0.0
        %1747 = vmatpush2.msra.mxu0 0.0
        %1748 = vmatprep.subr.mxu0 0.0
        %1749 = vmatpush2.msra.mxu0 0.0
        %1750 = vmatprep.subr.mxu0 0.0
        %1751 = vmatpush2.msra.mxu0 0.0
        %1752 = vmatprep.subr.mxu0 0.0
        %1753 = vmatpush2.msra.mxu0 0.0
        %1754 = vmatprep.mubr.f32.mxu0 0.0
        %1755 = vmatmul.mubr.f32.gmra.mxu0 %v1617
        %v1756 = vpop.f32.mrf.mxu0
        %v1757 = vadd.f32 0.0, %v1756
        %v1758 = vpop.f32.mrf.mxu0
        %v1759 = vadd.f32 0.0, %v1758
        %1760 = vdwg.mxu0
        %1765 = vrot.lane.b32.xlu0 %v1686, 78
        %v1766 = vpop.permute.xlu0 %1765
        %1767 = vrot.lane.b32.xlu0 %v1688, 78
        %v1768 = vpop.permute.xlu0 %1767
        %1769 = vrot.lane.b32.xlu0 %v1757, 78
        %v1770 = vpop.permute.xlu0 %1769
        %1771 = vrot.lane.b32.xlu0 %v1759, 78
        %v1772 = vpop.permute.xlu0 %1771
        %vm1773 = vcmask 637952
        %v1774 = vsel %vm1773, %v1766, %v1768
        %v1775 = vsel %vm1773, %v1768, %v1770
        %v1776 = vsel %vm1773, %v1770, %v1772
        %v1780 = vadd.f32 %v1611, %v1774
        %v1781 = vadd.f32 %v1612, %v1775
        %v1782 = vadd.f32 %v1613, %v1776
        %v1783 = vld [vmem:[%s2] sm:$0xf]
        %1785 = vset.pattern.permute.xlu0 0
        %1786 = vperm.xlu0 %1785, %v1783
        %v1787 = vpop.permute.xlu0 %1786
        %v1789 = vadd.f32 %v1780, %v1787
        %v1790 = vadd.f32 %v1781, %v1787
        %v1791 = vadd.f32 %v1782, %v1787
        %v1792 = vmax.f32 %v1789, 0.0
        %v1793 = vmax.f32 %v1790, 0.0
        %v1794 = vmax.f32 %v1791, 0.0
        %v1795 = vld [vmem:[%s3] sm:$0x3]
        %v1796 = vld [vmem:[%s4] sm:$0x3]
        %1798 = vset.pattern.permute.xlu0 0
        %1799 = vperm.xlu0 %1798, %v1796
        %v1800 = vpop.permute.xlu0 %1799
        %vm1802 = vcmask 31744
        %v1804 = vsel %vm1802, %v1795, 0
        %vm1806 = vcmask 1043456
        %v1808 = vsel %vm1806, %v1792, 0
        %v1811 = vsel %vm1806, %v1793, 0
        %v1814 = vsel %vm1806, %v1794, 0
        %1816 = vmatprep.subr.mxu0 0.0
        %1817 = vmatpush1.msra.mxu0 0.0
        %1818 = vmatprep.subr.mxu0 0.0
        %1819 = vmatpush1.msra.mxu0 0.0
        %1820 = vmatprep.subr.mxu0 0.0
        %1821 = vmatpush1.msra.mxu0 0.0
        %1822 = vmatprep.subr.mxu0 0.0
        %1823 = vmatpush1.msra.mxu0 0.0
        %1824 = vmatprep.subr.mxu0 0.0
        %1825 = vmatpush1.msra.mxu0 0.0
        %1826 = vmatprep.subr.mxu0 0.0
        %1827 = vmatpush1.msra.mxu0 0.0
        %1828 = vmatprep.subr.mxu0 0.0
        %1829 = vmatpush1.msra.mxu0 0.0
        %1830 = vmatprep.subr.mxu0 0.0
        %1831 = vmatpush1.msra.mxu0 0.0
        %1832 = vmatprep.subr.mxu0 0.0
        %1833 = vmatpush1.msra.mxu0 0.0
        %1834 = vmatprep.subr.mxu0 0.0
        %1835 = vmatpush1.msra.mxu0 0.0
        %1836 = vmatprep.subr.mxu0 0.0
        %1837 = vmatpush1.msra.mxu0 0.0
        %1838 = vmatprep.subr.mxu0 0.0
        %1839 = vmatpush1.msra.mxu0 0.0
        %1840 = vmatprep.subr.mxu0 0.0
        %1841 = vmatpush1.msra.mxu0 0.0
        %1842 = vmatprep.subr.mxu0 0.0
        %1843 = vmatpush1.msra.mxu0 0.0
        %1844 = vmatprep.subr.mxu0 0.0
        %1845 = vmatpush1.msra.mxu0 0.0
        %1846 = vmatprep.subr.mxu0 %v1811
        %1847 = vmatpush1.msra.mxu0 %v1808
        %1848 = vmatprep.subr.mxu0 0.0
        %1849 = vmatpush2.msra.mxu0 0.0
        %1850 = vmatprep.subr.mxu0 0.0
        %1851 = vmatpush2.msra.mxu0 0.0
        %1852 = vmatprep.subr.mxu0 0.0
        %1853 = vmatpush2.msra.mxu0 0.0
        %1854 = vmatprep.subr.mxu0 0.0
        %1855 = vmatpush2.msra.mxu0 0.0
        %1856 = vmatprep.subr.mxu0 0.0
        %1857 = vmatpush2.msra.mxu0 0.0
        %1858 = vmatprep.subr.mxu0 0.0
        %1859 = vmatpush2.msra.mxu0 0.0
        %1860 = vmatprep.subr.mxu0 0.0
        %1861 = vmatpush2.msra.mxu0 0.0
        %1862 = vmatprep.subr.mxu0 0.0
        %1863 = vmatpush2.msra.mxu0 0.0
        %1864 = vmatprep.subr.mxu0 0.0
        %1865 = vmatpush2.msra.mxu0 0.0
        %1866 = vmatprep.subr.mxu0 0.0
        %1867 = vmatpush2.msra.mxu0 0.0
        %1868 = vmatprep.subr.mxu0 0.0
        %1869 = vmatpush2.msra.mxu0 0.0
        %1870 = vmatprep.subr.mxu0 0.0
        %1871 = vmatpush2.msra.mxu0 0.0
        %1872 = vmatprep.subr.mxu0 0.0
        %1873 = vmatpush2.msra.mxu0 0.0
        %1874 = vmatprep.subr.mxu0 0.0
        %1875 = vmatpush2.msra.mxu0 0.0
        %1876 = vmatprep.subr.mxu0 0.0
        %1877 = vmatpush2.msra.mxu0 0.0
        %1878 = vmatprep.subr.mxu0 0.0
        %1879 = vmatpush2.msra.mxu0 0.0
        %1880 = vmatprep.mubr.f32.mxu0 0.0
        %1881 = vmatmul.mubr.f32.gmra.mxu0 %v1804
        %v1882 = vpop.f32.mrf.mxu0
        %v1883 = vadd.f32 %v1800, %v1882
        %v1884 = vpop.f32.mrf.mxu0
        %v1885 = vadd.f32 %v1800, %v1884
        %1886 = vdwg.mxu0
        %1887 = vmatprep.subr.mxu0 0.0
        %1888 = vmatpush1.msra.mxu0 0.0
        %1889 = vmatprep.subr.mxu0 0.0
        %1890 = vmatpush1.msra.mxu0 0.0
        %1891 = vmatprep.subr.mxu0 0.0
        %1892 = vmatpush1.msra.mxu0 0.0
        %1893 = vmatprep.subr.mxu0 0.0
        %1894 = vmatpush1.msra.mxu0 0.0
        %1895 = vmatprep.subr.mxu0 0.0
        %1896 = vmatpush1.msra.mxu0 0.0
        %1897 = vmatprep.subr.mxu0 0.0
        %1898 = vmatpush1.msra.mxu0 0.0
        %1899 = vmatprep.subr.mxu0 0.0
        %1900 = vmatpush1.msra.mxu0 0.0
        %1901 = vmatprep.subr.mxu0 0.0
        %1902 = vmatpush1.msra.mxu0 0.0
        %1903 = vmatprep.subr.mxu0 0.0
        %1904 = vmatpush1.msra.mxu0 0.0
        %1905 = vmatprep.subr.mxu0 0.0
        %1906 = vmatpush1.msra.mxu0 0.0
        %1907 = vmatprep.subr.mxu0 0.0
        %1908 = vmatpush1.msra.mxu0 0.0
        %1909 = vmatprep.subr.mxu0 0.0
        %1910 = vmatpush1.msra.mxu0 0.0
        %1911 = vmatprep.subr.mxu0 0.0
        %1912 = vmatpush1.msra.mxu0 0.0
        %1913 = vmatprep.subr.mxu0 0.0
        %1914 = vmatpush1.msra.mxu0 0.0
        %1915 = vmatprep.subr.mxu0 0.0
        %1916 = vmatpush1.msra.mxu0 0.0
        %1917 = vmatprep.subr.mxu0 0.0
        %1918 = vmatpush1.msra.mxu0 %v1814
        %1919 = vmatprep.subr.mxu0 0.0
        %1920 = vmatpush2.msra.mxu0 0.0
        %1921 = vmatprep.subr.mxu0 0.0
        %1922 = vmatpush2.msra.mxu0 0.0
        %1923 = vmatprep.subr.mxu0 0.0
        %1924 = vmatpush2.msra.mxu0 0.0
        %1925 = vmatprep.subr.mxu0 0.0
        %1926 = vmatpush2.msra.mxu0 0.0
        %1927 = vmatprep.subr.mxu0 0.0
        %1928 = vmatpush2.msra.mxu0 0.0
        %1929 = vmatprep.subr.mxu0 0.0
        %1930 = vmatpush2.msra.mxu0 0.0
        %1931 = vmatprep.subr.mxu0 0.0
        %1932 = vmatpush2.msra.mxu0 0.0
        %1933 = vmatprep.subr.mxu0 0.0
        %1934 = vmatpush2.msra.mxu0 0.0
        %1935 = vmatprep.subr.mxu0 0.0
        %1936 = vmatpush2.msra.mxu0 0.0
        %1937 = vmatprep.subr.mxu0 0.0
        %1938 = vmatpush2.msra.mxu0 0.0
        %1939 = vmatprep.subr.mxu0 0.0
        %1940 = vmatpush2.msra.mxu0 0.0
        %1941 = vmatprep.subr.mxu0 0.0
        %1942 = vmatpush2.msra.mxu0 0.0
        %1943 = vmatprep.subr.mxu0 0.0
        %1944 = vmatpush2.msra.mxu0 0.0
        %1945 = vmatprep.subr.mxu0 0.0
        %1946 = vmatpush2.msra.mxu0 0.0
        %1947 = vmatprep.subr.mxu0 0.0
        %1948 = vmatpush2.msra.mxu0 0.0
        %1949 = vmatprep.subr.mxu0 0.0
        %1950 = vmatpush2.msra.mxu0 0.0
        %1951 = vmatprep.mubr.f32.mxu0 0.0
        %1952 = vmatmul.mubr.f32.gmra.mxu0 %v1804
        %v1953 = vpop.f32.mrf.mxu0
        %v1954 = vadd.f32 %v1800, %v1953
        %v1955 = vpop.f32.mrf.mxu0
        %1956 = vdwg.mxu0
        %v1960 = vcombine.low %v1883, %v1885
        %v1962 = vunpack.c.l.s4 1983009808
        %v1963 = vunpack.c.0.s8 %v1962
        %v1964 = vlaneseq
        %v1965 = vshrl.u32 %v1964, 7
        %v1966 = vsub.s32 %v1963, %v1965
        %v1967 = vrot.slane %v1960, %v1966
        %v1969 = vunpack.c.l.s4 1983009808
        %v1970 = vunpack.c.0.s8 %v1969
        %v1971 = vlaneseq
        %v1972 = vshrl.u32 %v1971, 7
        %v1973 = vsub.s32 %v1970, %v1972
        %v1974 = vrot.slane %v1954, %v1973
        %v1975 = vcombine.low %v1967, %v1974
        %1977 = vst [vmem:[%s274] sm:$0x3f] %v1975
        %s1978 = sand.u32 %s157, 1
        %s1979 = scalar_lea.sflag [#allocation4], %s1978
        %s1980 = sand.u32 %s157, 1
        %s1981 = smul.addr %s1980, 6
        %s1982 = scalar_lea.vmem [#allocation7], %s1981
        // Predicated region
        $region49: #{tpu_custom_call.1} parent=39 // pred_check
          %p1983 = pneg %p167
        $region50: #{tpu_custom_call.1} parent=39 // pred_check_branch
          %1985 = sbr.rel (%p1983) target = $region52
        $region51: #{tpu_custom_call.1} parent=39 // pred_region
          %s1986 = smul.u32 3, %s28
          %s1988 = ssub.s32 96, 96
          %1989 = vsyncadd %s1979, %s1988
          %s1990 = smul.addr %s27, 3
          %s1991 = sadd.s32 %s1986, %s1990
          %s1992 = smul.addr %s1991, 32
          %s1993 = scalar_lea.hbm %s5, %s1992
          %s1995 = sshll.u32 %s1982, 4
          %s1996 = int_to_ptr.vmem [resolvable:$true] %s1995
          %1998 = dma.vmem_to_hbm [thread:$0]  %s1996, 96, %s1993, %s1979
        $region52: #{tpu_custom_call.1} parent=39 // pred_fallthru
          _
      $region40: #{tpu_custom_call.1} parent=5 // pred_fallthru
        _
      %p1999 = scmp.le.s32.totalorder 2, %s18
      // Predicated region
      $region53: #{tpu_custom_call.1} parent=5 // pred_check
        %p2000 = pneg %p1999
      $region54: #{tpu_custom_call.1} parent=5 // pred_check_branch
        %2002 = sbr.rel (%p2000) target = $region56
      $region55: #{tpu_custom_call.1} parent=5 // pred_region
        %s2003 = ssub.s32 %s18, 2
        // Predicated region
        $region57: #{tpu_custom_call.1} parent=55 // pred_check
          %p2004 = pneg %p173
        $region58: #{tpu_custom_call.1} parent=55 // pred_check_branch
          %2006 = sbr.rel (%p2004) target = $region60
        $region59: #{tpu_custom_call.1} parent=55 // pred_region
          %s2007 = sand.u32 %s158, 1
          %s2008 = scalar_lea.sflag [#allocation4], %s2007
          %s2009 = sand.u32 %s158, 1
          %s2010 = smul.addr %s2009, 6
          %s2011 = scalar_lea.vmem [#allocation7], %s2010
          %2012 = dma.done %s2008, 96
        $region60: #{tpu_custom_call.1} parent=55 // pred_fallthru
          _
      $region56: #{tpu_custom_call.1} parent=5 // pred_fallthru
        _
    $region6: #{tpu_custom_call.1} parent=1 // loop_footer
      %s22 = sadd.s32 1, %s18
    $region7: #{tpu_custom_call.1} parent=1 // loop_footer_branch
      %17 = sbr.rel target = $region3
    $region8: #{tpu_custom_call.1} parent=1 // loop_exit
      _
    %2013 = vsyncpa [#allocation3], 1
    %s2014 = scalar_lea.sflag [#allocation3], 1
    %2015 = vsyncpa %s2014, 1
    %2016 = vsyncpa [#allocation6], 1
    %2017 = vsyncpa [#allocation4], 1
    %s2018 = scalar_lea.sflag [#allocation4], 1
    %2019 = vsyncpa %s2018, 1

</llo_original>
